<compile_context>
chip_gen: v7x
topology: tpu7x:2x2x1
jax: 0.10.0
libtpu: 0.0.40
codegen_flags: <defaults>
</compile_context>

<pallas_src>
from functools import partial

import jax
import jax.numpy as jnp
from jax.experimental import pallas as pl
from jax.experimental.pallas import tpu as pltpu


def _round_up(x, m):
    return ((x + m - 1) // m) * m


def _vmem_limit_bytes():
    # Generation-aware VMEM budget (v5e/v6e: 128 MiB physical, v7x: 64 MiB per TC);
    # leave ~25% headroom for Mosaic's own scratch, clamp to a sane range.
    try:
        cap = pltpu.get_tpu_info().vmem_capacity_bytes
    except Exception:
        cap = 64 * 1024 * 1024
    return max(32 * 1024 * 1024, min(int(cap * 3 // 4), 100 * 1024 * 1024))


# ---------------------------------------------------------------------------
# One-time (init) parameter prep — hoisted out of the jitted forward.
# ---------------------------------------------------------------------------
def prepare_embedding_tables(word_table, pos_table):
    """Pad + concatenate the two embedding tables into a single fused table.

    Returns (fused_table of shape (VP_pad, H), v_pad) where
        fused[:V]              = word_table      (word ids index directly)
        fused[v_pad:v_pad + P] = pos_table       (pos ids are offset by v_pad)
    and every padding row is zero.  V is padded to a multiple of 128 so the MXU
    contraction dimension stays lane-dense and offset pos ids never collide with
    word ids.
    """
    V, H = word_table.shape
    P, H2 = pos_table.shape
    assert H == H2
    v_pad = _round_up(V, 128)
    vp_pad = _round_up(v_pad + P, 128)
    fused = jnp.zeros((vp_pad, H), word_table.dtype)
    fused = fused.at[:V].set(word_table)
    fused = fused.at[v_pad:v_pad + P].set(pos_table)
    return fused, v_pad


# ---------------------------------------------------------------------------
# Kernel
# ---------------------------------------------------------------------------
def _embed_add_kernel(ids_ref, table_ref, out_ref):
    # ids_ref   : (t_tok, 2) int32   col 0 = word id, col 1 = v_pad + pos id
    # table_ref : (VP_pad, H)        fused [word ; pos] table, VMEM-resident
    # out_ref   : (t_tok, H)         lane-dense output slab (unmasked vst)
    ids = ids_ref[...]
    word_ids = ids[:, 0:1]                       # (t_tok, 1)
    pos_ids = ids[:, 1:2]                        # (t_tok, 1)
    t_tok = ids.shape[0]
    vp = table_ref.shape[0]

    # Fused "two-hot" gather: word ids live in [0, v_pad), offset pos ids in
    # [v_pad, VP_pad) -> no collisions, and the single MXU contraction produces
    # word_emb + pos_emb directly.
    iota = jax.lax.broadcasted_iota(jnp.int32, (t_tok, vp), 1)
    twohot = ((word_ids == iota) | (pos_ids == iota)).astype(table_ref.dtype)

    # HIGHEST precision: an embedding gather must reproduce the table rows exactly.
    out_ref[...] = jnp.dot(
        twohot,
        table_ref[...],
        preferred_element_type=jnp.float32,
        precision=jax.lax.Precision.HIGHEST,
    ).astype(out_ref.dtype)


# ---------------------------------------------------------------------------
# Forward
# ---------------------------------------------------------------------------
@partial(jax.jit, static_argnums=(3, 4))
def _forward_impl(input_ids, pos_ids, fused_table, v_pad, single_buffer_table):
    B, S = input_ids.shape
    VP_pad, H = fused_table.shape
    vmem_limit = _vmem_limit_bytes()

    # Resident-table gate: single copy when Buffered(1), otherwise default double buffer.
    table_copies = 1 if single_buffer_table else 2
    table_bytes = table_copies * VP_pad * H * fused_table.dtype.itemsize
    assert table_bytes <= vmem_limit // 2, (
        "fused embedding table too large for the VMEM-resident one-hot path; "
        "switch to a vocab-tiled reduction or an HBM-resident DMA row gather"
    )

    # Flatten (B, S) into one token axis; tile at up to 512 tokens per grid step
    # (fewer steps on v6e/v7x, full MXU rows).  f32 output only needs sublane
    # multiples of 8; use 16 if the output is ever made sub-32-bit.
    T = B * S
    t_tok = min(512, _round_up(T, 8))
    T_pad = _round_up(T, t_tok)

    # Merge the two id streams into one (T, 2) int32 array -> one DMA per grid step.
    ids2 = jnp.concatenate(
        [input_ids.astype(jnp.int32).reshape(T, 1),
         pos_ids.astype(jnp.int32).reshape(T, 1) + v_pad],
        axis=1,
    )
    if T_pad != T:
        # Padded tokens select row 0 (a zero / word row); their outputs are sliced off.
        ids2 = jnp.pad(ids2, ((0, T_pad - T), (0, 0)))

    # Grid-invariant fused table: single-buffer it when supported (halves table VMEM).
    if single_buffer_table:
        table_spec = pl.BlockSpec((VP_pad, H), lambda t: (0, 0),
                                  pipeline_mode=pl.Buffered(1))
    else:
        table_spec = pl.BlockSpec((VP_pad, H), lambda t: (0, 0))

    out = pl.pallas_call(
        _embed_add_kernel,
        out_shape=jax.ShapeDtypeStruct((T_pad, H), fused_table.dtype),
        grid=(T_pad // t_tok,),
        in_specs=[
            pl.BlockSpec((t_tok, 2), lambda t: (t, 0)),   # merged [word_id, pos_id + v_pad]
            table_spec,                                   # fused table, VMEM-resident
        ],
        out_specs=pl.BlockSpec((t_tok, H), lambda t: (t, 0)),
        compiler_params=pltpu.CompilerParams(
            # Token tiles are independent -> shard across both TCs on v7x;
            # harmless on single-TC v5e/v6e.
            dimension_semantics=("parallel",),
            vmem_limit_bytes=vmem_limit,
        ),
    )(ids2, fused_table)

    return out[:T].reshape(B, S, H)


_SINGLE_BUFFER_TABLE_OK = True  # flipped off once if pl.Buffered(1) is rejected


def my_embeddings_forward(input_ids, pos_ids, fused_table, v_pad):
    """embeddings = word_embeddings[input_ids] + pos_embeddings[pos_ids]."""
    global _SINGLE_BUFFER_TABLE_OK
    if _SINGLE_BUFFER_TABLE_OK:
        try:
            return _forward_impl(input_ids, pos_ids, fused_table, int(v_pad), True)
        except Exception:
            # Graceful fallback if this jax version rejects buffer_count=1 for a
            # pipelined BlockSpec; semantics are identical, only table VMEM doubles.
            _SINGLE_BUFFER_TABLE_OK = False
    return _forward_impl(input_ids, pos_ids, fused_table, int(v_pad), False)


if __name__ == "__main__":
    # Small synthetic config consistent with the module's __init__
    vocab_size = 64
    hidden_size = 128
    pos_vocab = 18          # nn.Embedding(18, hidden_size)
    batch, seq = 2, 8

    key = jax.random.PRNGKey(0)
    k_word, k_pos, k_ids, k_pids = jax.random.split(key, 4)

    word_table = 0.02 * jax.random.normal(k_word, (vocab_size, hidden_size), jnp.float32)
    # nn.Embedding(..., padding_idx=0): row 0 is zeros
    word_table = word_table.at[0].set(0.0)
    pos_table = 0.02 * jax.random.normal(k_pos, (pos_vocab, hidden_size), jnp.float32)

    input_ids = jax.random.randint(k_ids, (batch, seq), 0, vocab_size, jnp.int32)
    pos_ids = jax.random.randint(k_pids, (batch, seq), 0, pos_vocab, jnp.int32)

    # One-time parameter prep (hoisted out of the per-call forward).
    fused_table, v_pad = prepare_embedding_tables(word_table, pos_table)
    fused_table = jax.block_until_ready(fused_table)

    out = my_embeddings_forward(input_ids, pos_ids, fused_table, v_pad)
    out = jax.block_until_ready(out)

    # Reference (plain JAX) check — exact row copies, so tight tolerance.
    ref = jnp.take(word_table, input_ids, axis=0) + jnp.take(pos_table, pos_ids, axis=0)
    assert out.shape == (batch, seq, hidden_size)
    assert jnp.allclose(out, ref, atol=1e-6, rtol=1e-6)

    print("KERNEL_OK")
</pallas_src>

<mosaic_0001>
module attributes {stable_mosaic.version = 11 : i64} {
  func.func @_embed_add_kernel(%arg0: i32, %arg1: memref<16x2xi32, #tpu.memory_space<vmem>>, %arg2: memref<256x128xf32, #tpu.memory_space<vmem>>, %arg3: memref<16x128xf32, #tpu.memory_space<vmem>>) attributes {dimension_semantics = [#tpu.dimension_semantics<parallel>], iteration_bounds = array<i64: 1>, scalar_prefetch = 0 : i64, scratch_operands = 0 : i64, tpu.core_type = #tpu.core_type<tc>, window_params = [{transform_indices = @transform_0, window_bounds = array<i64: 16, 2>}, {pipeline_mode = #tpu.pipeline_mode<synchronous>, transform_indices = @transform_1, window_bounds = array<i64: 256, 128>}, {transform_indices = @transform_2, window_bounds = array<i64: 16, 128>}]} {
    %c0 = arith.constant 0 : index
    %c0_0 = arith.constant 0 : index
    %0 = vector.load %arg1[%c0, %c0_0] : memref<16x2xi32, #tpu.memory_space<vmem>>, vector<16x2xi32>
    %1 = vector.extract_strided_slice %0 {offsets = [0, 0], sizes = [16, 1], strides = [1, 1]} : vector<16x2xi32> to vector<16x1xi32>
    %2 = vector.extract_strided_slice %0 {offsets = [0, 1], sizes = [16, 1], strides = [1, 1]} : vector<16x2xi32> to vector<16x1xi32>
    %3 = tpu.iota {dimensions = array<i32: 1>} : vector<16x256xi32>
    %4 = vector.broadcast %1 : vector<16x1xi32> to vector<16x256xi32>
    %5 = arith.cmpi eq, %4, %3 : vector<16x256xi32>
    %6 = vector.broadcast %2 : vector<16x1xi32> to vector<16x256xi32>
    %7 = arith.cmpi eq, %6, %3 : vector<16x256xi32>
    %8 = arith.ori %5, %7 : vector<16x256xi1>
    %9 = arith.extui %8 : vector<16x256xi1> to vector<16x256xi32>
    %10 = arith.sitofp %9 : vector<16x256xi32> to vector<16x256xf32>
    %c0_1 = arith.constant 0 : index
    %c0_2 = arith.constant 0 : index
    %11 = vector.load %arg2[%c0_1, %c0_2] : memref<256x128xf32, #tpu.memory_space<vmem>>, vector<256x128xf32>
    %cst = arith.constant dense<0.000000e+00> : vector<16x128xf32>
    %12 = tpu.matmul %10, %11, %cst {dimension_numbers = #tpu.dot_dimension_numbers<[1], [0], [0], [1], [0, 0, 1, 1], [], []>, precision = #tpu.contract_precision<fp32>} : vector<16x256xf32>, vector<256x128xf32>, vector<16x128xf32> -> vector<16x128xf32>
    %c0_3 = arith.constant 0 : index
    %c0_4 = arith.constant 0 : index
    %13 = vector.load %arg3[%c0_3, %c0_4] : memref<16x128xf32, #tpu.memory_space<vmem>>, vector<16x128xf32>
    tpu.vector_store %arg3[%c0_3, %c0_4], %12 {strides = array<i32>} : memref<16x128xf32, #tpu.memory_space<vmem>>, vector<16x128xf32>,
    return
  }
  func.func @transform_0(%arg0: i32) -> (i32, i32) {
    %c0_i32 = arith.constant 0 : i32
    %c0_i32_0 = arith.constant 0 : i32
    return %arg0, %c0_i32 : i32, i32
  }
  func.func @transform_1(%arg0: i32) -> (i32, i32) {
    %c0_i32 = arith.constant 0 : i32
    %c0_i32_0 = arith.constant 0 : i32
    %c0_i32_1 = arith.constant 0 : i32
    return %c0_i32, %c0_i32_0 : i32, i32
  }
  func.func @transform_2(%arg0: i32) -> (i32, i32) {
    %c0_i32 = arith.constant 0 : i32
    %c0_i32_0 = arith.constant 0 : i32
    return %arg0, %c0_i32 : i32, i32
  }
}

module attributes {stable_mosaic.version = 11 : i64} {
  func.func @_embed_add_kernel(%arg0: i32, %arg1: memref<16x2xi32, #tpu.memory_space<vmem>>, %arg2: memref<256x128xf32, #tpu.memory_space<vmem>>, %arg3: memref<16x128xf32, #tpu.memory_space<vmem>>) attributes {dimension_semantics = [#tpu.dimension_semantics<parallel>], iteration_bounds = array<i64: 1>, scalar_prefetch = 0 : i64, scratch_operands = 0 : i64, tpu.core_type = #tpu.core_type<tc>, window_params = [{transform_indices = @transform_0, window_bounds = array<i64: 16, 2>}, {pipeline_mode = #tpu.pipeline_mode<synchronous>, transform_indices = @transform_1, window_bounds = array<i64: 256, 128>}, {transform_indices = @transform_2, window_bounds = array<i64: 16, 128>}]} {
    %c0 = arith.constant 0 : index
    %c0_0 = arith.constant 0 : index
    %0 = vector.load %arg1[%c0, %c0_0] : memref<16x2xi32, #tpu.memory_space<vmem>>, vector<16x2xi32>
    %1 = vector.extract_strided_slice %0 {offsets = [0, 0], sizes = [16, 1], strides = [1, 1]} : vector<16x2xi32> to vector<16x1xi32>
    %2 = vector.extract_strided_slice %0 {offsets = [0, 1], sizes = [16, 1], strides = [1, 1]} : vector<16x2xi32> to vector<16x1xi32>
    %3 = tpu.iota {dimensions = array<i32: 1>} : vector<16x256xi32>
    %4 = vector.broadcast %1 : vector<16x1xi32> to vector<16x256xi32>
    %5 = arith.cmpi eq, %4, %3 : vector<16x256xi32>
    %6 = vector.broadcast %2 : vector<16x1xi32> to vector<16x256xi32>
    %7 = arith.cmpi eq, %6, %3 : vector<16x256xi32>
    %8 = arith.ori %5, %7 : vector<16x256xi1>
    %9 = arith.extui %8 : vector<16x256xi1> to vector<16x256xi32>
    %10 = arith.sitofp %9 : vector<16x256xi32> to vector<16x256xf32>
    %c0_1 = arith.constant 0 : index
    %c0_2 = arith.constant 0 : index
    %11 = vector.load %arg2[%c0_1, %c0_2] : memref<256x128xf32, #tpu.memory_space<vmem>>, vector<256x128xf32>
    %cst = arith.constant dense<0.000000e+00> : vector<16x128xf32>
    %12 = tpu.matmul %10, %11, %cst {dimension_numbers = #tpu.dot_dimension_numbers<[1], [0], [0], [1], [0, 0, 1, 1], [], []>, precision = #tpu.contract_precision<fp32>} : vector<16x256xf32>, vector<256x128xf32>, vector<16x128xf32> -> vector<16x128xf32>
    %c0_3 = arith.constant 0 : index
    %c0_4 = arith.constant 0 : index
    %13 = vector.load %arg3[%c0_3, %c0_4] : memref<16x128xf32, #tpu.memory_space<vmem>>, vector<16x128xf32>
    tpu.vector_store %arg3[%c0_3, %c0_4], %12 {strides = array<i32>} : memref<16x128xf32, #tpu.memory_space<vmem>>, vector<16x128xf32>,
    return
  }
  func.func @transform_0(%arg0: i32) -> (i32, i32) {
    %c0_i32 = arith.constant 0 : i32
    %c0_i32_0 = arith.constant 0 : i32
    return %arg0, %c0_i32 : i32, i32
  }
  func.func @transform_1(%arg0: i32) -> (i32, i32) {
    %c0_i32 = arith.constant 0 : i32
    %c0_i32_0 = arith.constant 0 : i32
    %c0_i32_1 = arith.constant 0 : i32
    return %c0_i32, %c0_i32_0 : i32, i32
  }
  func.func @transform_2(%arg0: i32) -> (i32, i32) {
    %c0_i32 = arith.constant 0 : i32
    %c0_i32_0 = arith.constant 0 : i32
    return %arg0, %c0_i32 : i32, i32
  }
}

</mosaic_0001>

<llo_original>
// kernel: _forward_impl.1
$region0: #{_forward_impl.1}
  #allocation0 [shape = 'u32[]', space=smem, size = 0x4, offset = 0x4, fixed_abs, tag = 'smem constant byte address 0x4 - core index']
  #allocation1 [shape = 'u32[144,128]{1,0:T(1,128)}', space=vmem, size = 0x12000, scoped, tag = 'internal scratch']
  %s0 = inlined_call_operand.vmem [shape: s32[16,2], index: 0, kind: input, shape index: {}]
  %s1 = inlined_call_operand.hbm [shape: f32[256,128], index: 1, kind: input, shape index: {}]
  %s2 = inlined_call_operand.hbm [shape: f32[16,128], index: 2, kind: output, shape index: {}]
  %s3 = sld [smem:[#allocation0]]
  $region22: #{_forward_impl.1} parent=0
    _
  %s5 = ssub.s32 1, %s3
  %s6 = scalar_select 0, %s5, %s3
  $region1: #{_forward_impl.1} parent=0
    #allocation2 [shape = 'u8[131072]{0}', space=vmem, size = 0x20000, scoped, tag = 'input window, operand 1, single buffered']
    #allocation3 [shape = 's32[1]{0}', space=sflag, size = 0x4, scoped, tag = 'scoped memory for _forward_impl.1']
    #allocation4 [shape = 's32[1]{0}', space=sflag, size = 0x4, scoped, tag = 'scoped memory for _forward_impl.1']
    #allocation5 [shape = 'u8[8192]{0}', space=vmem, size = 0x2000, scoped, tag = 'output window, operand 0, single buffered']
    %7 = vsyncpa [#allocation3], 0
    %8 = vsyncpa [#allocation4], 0
    // Predicated region
    $region2: #{_forward_impl.1} parent=1 // pred_check
      _
    $region3: #{_forward_impl.1} parent=1 // pred_check_branch
      %10 = sbr.rel (0) target = $region5
    $region4: #{_forward_impl.1} parent=1 // pred_region
      _
    $region5: #{_forward_impl.1} parent=1 // pred_fallthru
      _
    // Predicated region
    $region6: #{_forward_impl.1} parent=1 // pred_check
      _
    $region7: #{_forward_impl.1} parent=1 // pred_check_branch
      %12 = sbr.rel (0) target = $region9
    $region8: #{_forward_impl.1} parent=1 // pred_region
      %s14 = ssub.s32 4096, 4096
      %15 = vsyncadd [#allocation3], %s14
      %s16 = sshll.u32 [#allocation2], 4
      %s17 = int_to_ptr.vmem [resolvable:$true] %s16
      %22 = dma.hbm_to_vmem [thread:$0]  %s1, 4096, %s17, [#allocation3], 128, 128, 8
    $region9: #{_forward_impl.1} parent=1 // pred_fallthru
      _
    // Predicated region
    $region10: #{_forward_impl.1} parent=1 // pred_check
      _
    $region11: #{_forward_impl.1} parent=1 // pred_check_branch
      %24 = sbr.rel (0) target = $region13
    $region12: #{_forward_impl.1} parent=1 // pred_region
      %25 = dma.done [#allocation3], 4096
    $region13: #{_forward_impl.1} parent=1 // pred_fallthru
      _
    %v26 = vld [vmem:[%s0] sm:$0xff]
    %v27 = vld [vmem:[%s0 + $0x8] sm:$0xff]
    %v28 = vlaneseq
    %v29 = vand.u32 %v28, 127
    %v30 = vadd.s32 %v29, 128
    %31 = vset.pattern.permute.xlu0 0
    %32 = vperm.xlu0 %31, %v26
    %v33 = vpop.permute.xlu0 %32
    %34 = vset.pattern.permute.xlu0 0
    %35 = vperm.xlu0 %34, %v27
    %v36 = vpop.permute.xlu0 %35
    %vm37 = vcmp.eq.s32.totalorder %v33, %v29
    %vm38 = vcmp.eq.s32.totalorder %v33, %v30
    %vm39 = vcmp.eq.s32.totalorder %v36, %v29
    %vm40 = vcmp.eq.s32.totalorder %v36, %v30
    %41 = vset.pattern.permute.xlu0 1
    %42 = vperm.xlu0 %41, %v26
    %v43 = vpop.permute.xlu0 %42
    %44 = vset.pattern.permute.xlu0 1
    %45 = vperm.xlu0 %44, %v27
    %v46 = vpop.permute.xlu0 %45
    %vm47 = vcmp.eq.s32.totalorder %v43, %v29
    %vm48 = vcmp.eq.s32.totalorder %v43, %v30
    %vm49 = vcmp.eq.s32.totalorder %v46, %v29
    %vm50 = vcmp.eq.s32.totalorder %v46, %v30
    %vm51 = vmor %vm37, %vm47
    %vm52 = vmor %vm38, %vm48
    %vm53 = vmor %vm39, %vm49
    %vm54 = vmor %vm40, %vm50
    %v55 = vsel %vm51, 1, 0
    %v56 = vsel %vm52, 1, 0
    %v57 = vsel %vm53, 1, 0
    %v58 = vsel %vm54, 1, 0
    %v59 = vcvt.s32.f32 %v55
    %v60 = vcvt.s32.f32 %v56
    %v61 = vcvt.s32.f32 %v57
    %v62 = vcvt.s32.f32 %v58
    %v63 = vld [vmem:[#allocation2] sm:$0xff]
    %v64 = vld [vmem:[#allocation2 + $0x8] sm:$0xff]
    %v65 = vld [vmem:[#allocation2 + $0x10] sm:$0xff]
    %v66 = vld [vmem:[#allocation2 + $0x18] sm:$0xff]
    %v67 = vld [vmem:[#allocation2 + $0x20] sm:$0xff]
    %v68 = vld [vmem:[#allocation2 + $0x28] sm:$0xff]
    %v69 = vld [vmem:[#allocation2 + $0x30] sm:$0xff]
    %v70 = vld [vmem:[#allocation2 + $0x38] sm:$0xff]
    %v71 = vld [vmem:[#allocation2 + $0x40] sm:$0xff]
    %v72 = vld [vmem:[#allocation2 + $0x48] sm:$0xff]
    %v73 = vld [vmem:[#allocation2 + $0x50] sm:$0xff]
    %v74 = vld [vmem:[#allocation2 + $0x58] sm:$0xff]
    %v75 = vld [vmem:[#allocation2 + $0x60] sm:$0xff]
    %v76 = vld [vmem:[#allocation2 + $0x68] sm:$0xff]
    %v77 = vld [vmem:[#allocation2 + $0x70] sm:$0xff]
    %v78 = vld [vmem:[#allocation2 + $0x78] sm:$0xff]
    %v79 = vld [vmem:[#allocation2 + $0x80] sm:$0xff]
    %v80 = vld [vmem:[#allocation2 + $0x88] sm:$0xff]
    %v81 = vld [vmem:[#allocation2 + $0x90] sm:$0xff]
    %v82 = vld [vmem:[#allocation2 + $0x98] sm:$0xff]
    %v83 = vld [vmem:[#allocation2 + $0xa0] sm:$0xff]
    %v84 = vld [vmem:[#allocation2 + $0xa8] sm:$0xff]
    %v85 = vld [vmem:[#allocation2 + $0xb0] sm:$0xff]
    %v86 = vld [vmem:[#allocation2 + $0xb8] sm:$0xff]
    %v87 = vld [vmem:[#allocation2 + $0xc0] sm:$0xff]
    %v88 = vld [vmem:[#allocation2 + $0xc8] sm:$0xff]
    %v89 = vld [vmem:[#allocation2 + $0xd0] sm:$0xff]
    %v90 = vld [vmem:[#allocation2 + $0xd8] sm:$0xff]
    %v91 = vld [vmem:[#allocation2 + $0xe0] sm:$0xff]
    %v92 = vld [vmem:[#allocation2 + $0xe8] sm:$0xff]
    %v93 = vld [vmem:[#allocation2 + $0xf0] sm:$0xff]
    %v94 = vld [vmem:[#allocation2 + $0xf8] sm:$0xff]
    %95 = vmatprep.subr.mxu0 0.0
    %v96 = vand.u32 %v63, 4294901760
    %97 = vmatpush1.msra.mxu0 %v96
    %98 = vmatprep.subr.mxu0 0.0
    %v99 = vand.u32 %v64, 4294901760
    %100 = vmatpush1.msra.mxu0 %v99
    %101 = vmatprep.subr.mxu0 0.0
    %v102 = vand.u32 %v65, 4294901760
    %103 = vmatpush1.msra.mxu0 %v102
    %104 = vmatprep.subr.mxu0 0.0
    %v105 = vand.u32 %v66, 4294901760
    %106 = vmatpush1.msra.mxu0 %v105
    %107 = vmatprep.subr.mxu0 0.0
    %v108 = vand.u32 %v67, 4294901760
    %109 = vmatpush1.msra.mxu0 %v108
    %110 = vmatprep.subr.mxu0 0.0
    %v111 = vand.u32 %v68, 4294901760
    %112 = vmatpush1.msra.mxu0 %v111
    %113 = vmatprep.subr.mxu0 0.0
    %v114 = vand.u32 %v69, 4294901760
    %115 = vmatpush1.msra.mxu0 %v114
    %116 = vmatprep.subr.mxu0 0.0
    %v117 = vand.u32 %v70, 4294901760
    %118 = vmatpush1.msra.mxu0 %v117
    %119 = vmatprep.subr.mxu0 0.0
    %v120 = vand.u32 %v71, 4294901760
    %121 = vmatpush1.msra.mxu0 %v120
    %122 = vmatprep.subr.mxu0 0.0
    %v123 = vand.u32 %v72, 4294901760
    %124 = vmatpush1.msra.mxu0 %v123
    %125 = vmatprep.subr.mxu0 0.0
    %v126 = vand.u32 %v73, 4294901760
    %127 = vmatpush1.msra.mxu0 %v126
    %128 = vmatprep.subr.mxu0 0.0
    %v129 = vand.u32 %v74, 4294901760
    %130 = vmatpush1.msra.mxu0 %v129
    %131 = vmatprep.subr.mxu0 0.0
    %v132 = vand.u32 %v75, 4294901760
    %133 = vmatpush1.msra.mxu0 %v132
    %134 = vmatprep.subr.mxu0 0.0
    %v135 = vand.u32 %v76, 4294901760
    %136 = vmatpush1.msra.mxu0 %v135
    %137 = vmatprep.subr.mxu0 0.0
    %v138 = vand.u32 %v77, 4294901760
    %139 = vmatpush1.msra.mxu0 %v138
    %140 = vmatprep.subr.mxu0 0.0
    %v141 = vand.u32 %v78, 4294901760
    %142 = vmatpush1.msra.mxu0 %v141
    %143 = vmatprep.subr.mxu0 0.0
    %v144 = vand.u32 %v79, 4294901760
    %145 = vmatpush1.msra.mxu0 %v144
    %146 = vmatprep.subr.mxu0 0.0
    %v147 = vand.u32 %v80, 4294901760
    %148 = vmatpush1.msra.mxu0 %v147
    %149 = vmatprep.subr.mxu0 0.0
    %v150 = vand.u32 %v81, 4294901760
    %151 = vmatpush1.msra.mxu0 %v150
    %152 = vmatprep.subr.mxu0 0.0
    %v153 = vand.u32 %v82, 4294901760
    %154 = vmatpush1.msra.mxu0 %v153
    %155 = vmatprep.subr.mxu0 0.0
    %v156 = vand.u32 %v83, 4294901760
    %157 = vmatpush1.msra.mxu0 %v156
    %158 = vmatprep.subr.mxu0 0.0
    %v159 = vand.u32 %v84, 4294901760
    %160 = vmatpush1.msra.mxu0 %v159
    %161 = vmatprep.subr.mxu0 0.0
    %v162 = vand.u32 %v85, 4294901760
    %163 = vmatpush1.msra.mxu0 %v162
    %164 = vmatprep.subr.mxu0 0.0
    %v165 = vand.u32 %v86, 4294901760
    %166 = vmatpush1.msra.mxu0 %v165
    %167 = vmatprep.subr.mxu0 0.0
    %v168 = vand.u32 %v87, 4294901760
    %169 = vmatpush1.msra.mxu0 %v168
    %170 = vmatprep.subr.mxu0 0.0
    %v171 = vand.u32 %v88, 4294901760
    %172 = vmatpush1.msra.mxu0 %v171
    %173 = vmatprep.subr.mxu0 0.0
    %v174 = vand.u32 %v89, 4294901760
    %175 = vmatpush1.msra.mxu0 %v174
    %176 = vmatprep.subr.mxu0 0.0
    %v177 = vand.u32 %v90, 4294901760
    %178 = vmatpush1.msra.mxu0 %v177
    %179 = vmatprep.subr.mxu0 0.0
    %v180 = vand.u32 %v91, 4294901760
    %181 = vmatpush1.msra.mxu0 %v180
    %182 = vmatprep.subr.mxu0 0.0
    %v183 = vand.u32 %v92, 4294901760
    %184 = vmatpush1.msra.mxu0 %v183
    %185 = vmatprep.subr.mxu0 0.0
    %v186 = vand.u32 %v93, 4294901760
    %187 = vmatpush1.msra.mxu0 %v186
    %188 = vmatprep.subr.mxu0 0.0
    %v189 = vand.u32 %v94, 4294901760
    %190 = vmatpush1.msra.mxu0 %v189
    %v191 = vand.u32 %v60, 4294901760
    %v192 = vsub.f32 %v60, %v191
    %v193 = vand.u32 %v192, 4294901760
    %v194 = vsub.f32 %v192, %v193
    %v195 = vand.u32 %v194, 4294901760
    %196 = vmatprep.mubr.f32.mxu0 %v195
    %v197 = vand.u32 %v59, 4294901760
    %v198 = vsub.f32 %v59, %v197
    %v199 = vand.u32 %v198, 4294901760
    %v200 = vsub.f32 %v198, %v199
    %v201 = vand.u32 %v200, 4294901760
    %202 = vmatmul.mubr.f32.gmra.mrb[0].mxu0 %v201
    %v203 = vpop.f32.mrb[0].mxu0
    %v204 = vadd.f32 0.0, %v203
    %v205 = vpop.f32.mrb[0].mxu0
    %v206 = vand.u32 %v62, 4294901760
    %v207 = vsub.f32 %v62, %v206
    %v208 = vand.u32 %v207, 4294901760
    %v209 = vsub.f32 %v207, %v208
    %v210 = vand.u32 %v209, 4294901760
    %211 = vmatprep.mubr.f32.mxu0 %v210
    %v212 = vand.u32 %v61, 4294901760
    %v213 = vsub.f32 %v61, %v212
    %v214 = vand.u32 %v213, 4294901760
    %v215 = vsub.f32 %v213, %v214
    %v216 = vand.u32 %v215, 4294901760
    %217 = vmatmul.mubr.f32.gmra.mrb[0].mxu0 %v216
    %v218 = vpop.f32.mrb[0].mxu0
    %v219 = vadd.f32 0.0, %v218
    %v220 = vpop.f32.mrb[0].mxu0
    %221 = vdwg.mxu0
    %222 = vmatprep.subr.mxu0 0.0
    %v223 = vand.u32 %v63, 4294901760
    %v224 = vsub.f32 %v63, %v223
    %v225 = vand.u32 %v224, 4294901760
    %v226 = vsub.f32 %v224, %v225
    %v227 = vand.u32 %v226, 4294901760
    %228 = vmatpush1.msra.mxu0 %v227
    %229 = vmatprep.subr.mxu0 0.0
    %v230 = vand.u32 %v64, 4294901760
    %v231 = vsub.f32 %v64, %v230
    %v232 = vand.u32 %v231, 4294901760
    %v233 = vsub.f32 %v231, %v232
    %v234 = vand.u32 %v233, 4294901760
    %235 = vmatpush1.msra.mxu0 %v234
    %236 = vmatprep.subr.mxu0 0.0
    %v237 = vand.u32 %v65, 4294901760
    %v238 = vsub.f32 %v65, %v237
    %v239 = vand.u32 %v238, 4294901760
    %v240 = vsub.f32 %v238, %v239
    %v241 = vand.u32 %v240, 4294901760
    %242 = vmatpush1.msra.mxu0 %v241
    %243 = vmatprep.subr.mxu0 0.0
    %v244 = vand.u32 %v66, 4294901760
    %v245 = vsub.f32 %v66, %v244
    %v246 = vand.u32 %v245, 4294901760
    %v247 = vsub.f32 %v245, %v246
    %v248 = vand.u32 %v247, 4294901760
    %249 = vmatpush1.msra.mxu0 %v248
    %250 = vmatprep.subr.mxu0 0.0
    %v251 = vand.u32 %v67, 4294901760
    %v252 = vsub.f32 %v67, %v251
    %v253 = vand.u32 %v252, 4294901760
    %v254 = vsub.f32 %v252, %v253
    %v255 = vand.u32 %v254, 4294901760
    %256 = vmatpush1.msra.mxu0 %v255
    %257 = vmatprep.subr.mxu0 0.0
    %v258 = vand.u32 %v68, 4294901760
    %v259 = vsub.f32 %v68, %v258
    %v260 = vand.u32 %v259, 4294901760
    %v261 = vsub.f32 %v259, %v260
    %v262 = vand.u32 %v261, 4294901760
    %263 = vmatpush1.msra.mxu0 %v262
    %264 = vmatprep.subr.mxu0 0.0
    %v265 = vand.u32 %v69, 4294901760
    %v266 = vsub.f32 %v69, %v265
    %v267 = vand.u32 %v266, 4294901760
    %v268 = vsub.f32 %v266, %v267
    %v269 = vand.u32 %v268, 4294901760
    %270 = vmatpush1.msra.mxu0 %v269
    %271 = vmatprep.subr.mxu0 0.0
    %v272 = vand.u32 %v70, 4294901760
    %v273 = vsub.f32 %v70, %v272
    %v274 = vand.u32 %v273, 4294901760
    %v275 = vsub.f32 %v273, %v274
    %v276 = vand.u32 %v275, 4294901760
    %277 = vmatpush1.msra.mxu0 %v276
    %278 = vmatprep.subr.mxu0 0.0
    %v279 = vand.u32 %v71, 4294901760
    %v280 = vsub.f32 %v71, %v279
    %v281 = vand.u32 %v280, 4294901760
    %v282 = vsub.f32 %v280, %v281
    %v283 = vand.u32 %v282, 4294901760
    %284 = vmatpush1.msra.mxu0 %v283
    %285 = vmatprep.subr.mxu0 0.0
    %v286 = vand.u32 %v72, 4294901760
    %v287 = vsub.f32 %v72, %v286
    %v288 = vand.u32 %v287, 4294901760
    %v289 = vsub.f32 %v287, %v288
    %v290 = vand.u32 %v289, 4294901760
    %291 = vmatpush1.msra.mxu0 %v290
    %292 = vmatprep.subr.mxu0 0.0
    %v293 = vand.u32 %v73, 4294901760
    %v294 = vsub.f32 %v73, %v293
    %v295 = vand.u32 %v294, 4294901760
    %v296 = vsub.f32 %v294, %v295
    %v297 = vand.u32 %v296, 4294901760
    %298 = vmatpush1.msra.mxu0 %v297
    %299 = vmatprep.subr.mxu0 0.0
    %v300 = vand.u32 %v74, 4294901760
    %v301 = vsub.f32 %v74, %v300
    %v302 = vand.u32 %v301, 4294901760
    %v303 = vsub.f32 %v301, %v302
    %v304 = vand.u32 %v303, 4294901760
    %305 = vmatpush1.msra.mxu0 %v304
    %306 = vmatprep.subr.mxu0 0.0
    %v307 = vand.u32 %v75, 4294901760
    %v308 = vsub.f32 %v75, %v307
    %v309 = vand.u32 %v308, 4294901760
    %v310 = vsub.f32 %v308, %v309
    %v311 = vand.u32 %v310, 4294901760
    %312 = vmatpush1.msra.mxu0 %v311
    %313 = vmatprep.subr.mxu0 0.0
    %v314 = vand.u32 %v76, 4294901760
    %v315 = vsub.f32 %v76, %v314
    %v316 = vand.u32 %v315, 4294901760
    %v317 = vsub.f32 %v315, %v316
    %v318 = vand.u32 %v317, 4294901760
    %319 = vmatpush1.msra.mxu0 %v318
    %320 = vmatprep.subr.mxu0 0.0
    %v321 = vand.u32 %v77, 4294901760
    %v322 = vsub.f32 %v77, %v321
    %v323 = vand.u32 %v322, 4294901760
    %v324 = vsub.f32 %v322, %v323
    %v325 = vand.u32 %v324, 4294901760
    %326 = vmatpush1.msra.mxu0 %v325
    %327 = vmatprep.subr.mxu0 0.0
    %v328 = vand.u32 %v78, 4294901760
    %v329 = vsub.f32 %v78, %v328
    %v330 = vand.u32 %v329, 4294901760
    %v331 = vsub.f32 %v329, %v330
    %v332 = vand.u32 %v331, 4294901760
    %333 = vmatpush1.msra.mxu0 %v332
    %334 = vmatprep.subr.mxu0 0.0
    %v335 = vand.u32 %v79, 4294901760
    %v336 = vsub.f32 %v79, %v335
    %v337 = vand.u32 %v336, 4294901760
    %v338 = vsub.f32 %v336, %v337
    %v339 = vand.u32 %v338, 4294901760
    %340 = vmatpush1.msra.mxu0 %v339
    %341 = vmatprep.subr.mxu0 0.0
    %v342 = vand.u32 %v80, 4294901760
    %v343 = vsub.f32 %v80, %v342
    %v344 = vand.u32 %v343, 4294901760
    %v345 = vsub.f32 %v343, %v344
    %v346 = vand.u32 %v345, 4294901760
    %347 = vmatpush1.msra.mxu0 %v346
    %348 = vmatprep.subr.mxu0 0.0
    %v349 = vand.u32 %v81, 4294901760
    %v350 = vsub.f32 %v81, %v349
    %v351 = vand.u32 %v350, 4294901760
    %v352 = vsub.f32 %v350, %v351
    %v353 = vand.u32 %v352, 4294901760
    %354 = vmatpush1.msra.mxu0 %v353
    %355 = vmatprep.subr.mxu0 0.0
    %v356 = vand.u32 %v82, 4294901760
    %v357 = vsub.f32 %v82, %v356
    %v358 = vand.u32 %v357, 4294901760
    %v359 = vsub.f32 %v357, %v358
    %v360 = vand.u32 %v359, 4294901760
    %361 = vmatpush1.msra.mxu0 %v360
    %362 = vmatprep.subr.mxu0 0.0
    %v363 = vand.u32 %v83, 4294901760
    %v364 = vsub.f32 %v83, %v363
    %v365 = vand.u32 %v364, 4294901760
    %v366 = vsub.f32 %v364, %v365
    %v367 = vand.u32 %v366, 4294901760
    %368 = vmatpush1.msra.mxu0 %v367
    %369 = vmatprep.subr.mxu0 0.0
    %v370 = vand.u32 %v84, 4294901760
    %v371 = vsub.f32 %v84, %v370
    %v372 = vand.u32 %v371, 4294901760
    %v373 = vsub.f32 %v371, %v372
    %v374 = vand.u32 %v373, 4294901760
    %375 = vmatpush1.msra.mxu0 %v374
    %376 = vmatprep.subr.mxu0 0.0
    %v377 = vand.u32 %v85, 4294901760
    %v378 = vsub.f32 %v85, %v377
    %v379 = vand.u32 %v378, 4294901760
    %v380 = vsub.f32 %v378, %v379
    %v381 = vand.u32 %v380, 4294901760
    %382 = vmatpush1.msra.mxu0 %v381
    %383 = vmatprep.subr.mxu0 0.0
    %v384 = vand.u32 %v86, 4294901760
    %v385 = vsub.f32 %v86, %v384
    %v386 = vand.u32 %v385, 4294901760
    %v387 = vsub.f32 %v385, %v386
    %v388 = vand.u32 %v387, 4294901760
    %389 = vmatpush1.msra.mxu0 %v388
    %390 = vmatprep.subr.mxu0 0.0
    %v391 = vand.u32 %v87, 4294901760
    %v392 = vsub.f32 %v87, %v391
    %v393 = vand.u32 %v392, 4294901760
    %v394 = vsub.f32 %v392, %v393
    %v395 = vand.u32 %v394, 4294901760
    %396 = vmatpush1.msra.mxu0 %v395
    %397 = vmatprep.subr.mxu0 0.0
    %v398 = vand.u32 %v88, 4294901760
    %v399 = vsub.f32 %v88, %v398
    %v400 = vand.u32 %v399, 4294901760
    %v401 = vsub.f32 %v399, %v400
    %v402 = vand.u32 %v401, 4294901760
    %403 = vmatpush1.msra.mxu0 %v402
    %404 = vmatprep.subr.mxu0 0.0
    %v405 = vand.u32 %v89, 4294901760
    %v406 = vsub.f32 %v89, %v405
    %v407 = vand.u32 %v406, 4294901760
    %v408 = vsub.f32 %v406, %v407
    %v409 = vand.u32 %v408, 4294901760
    %410 = vmatpush1.msra.mxu0 %v409
    %411 = vmatprep.subr.mxu0 0.0
    %v412 = vand.u32 %v90, 4294901760
    %v413 = vsub.f32 %v90, %v412
    %v414 = vand.u32 %v413, 4294901760
    %v415 = vsub.f32 %v413, %v414
    %v416 = vand.u32 %v415, 4294901760
    %417 = vmatpush1.msra.mxu0 %v416
    %418 = vmatprep.subr.mxu0 0.0
    %v419 = vand.u32 %v91, 4294901760
    %v420 = vsub.f32 %v91, %v419
    %v421 = vand.u32 %v420, 4294901760
    %v422 = vsub.f32 %v420, %v421
    %v423 = vand.u32 %v422, 4294901760
    %424 = vmatpush1.msra.mxu0 %v423
    %425 = vmatprep.subr.mxu0 0.0
    %v426 = vand.u32 %v92, 4294901760
    %v427 = vsub.f32 %v92, %v426
    %v428 = vand.u32 %v427, 4294901760
    %v429 = vsub.f32 %v427, %v428
    %v430 = vand.u32 %v429, 4294901760
    %431 = vmatpush1.msra.mxu0 %v430
    %432 = vmatprep.subr.mxu0 0.0
    %v433 = vand.u32 %v93, 4294901760
    %v434 = vsub.f32 %v93, %v433
    %v435 = vand.u32 %v434, 4294901760
    %v436 = vsub.f32 %v434, %v435
    %v437 = vand.u32 %v436, 4294901760
    %438 = vmatpush1.msra.mxu0 %v437
    %439 = vmatprep.subr.mxu0 0.0
    %v440 = vand.u32 %v94, 4294901760
    %v441 = vsub.f32 %v94, %v440
    %v442 = vand.u32 %v441, 4294901760
    %v443 = vsub.f32 %v441, %v442
    %v444 = vand.u32 %v443, 4294901760
    %445 = vmatpush1.msra.mxu0 %v444
    %v446 = vand.u32 %v60, 4294901760
    %447 = vmatprep.mubr.f32.mxu0 %v446
    %v448 = vand.u32 %v59, 4294901760
    %449 = vmatmul.mubr.f32.gmra.mrb[0].mxu0 %v448
    %v450 = vpop.f32.mrb[0].mxu0
    %v451 = vadd.f32 %v204, %v450
    %v452 = vpop.f32.mrb[0].mxu0
    %v453 = vand.u32 %v62, 4294901760
    %454 = vmatprep.mubr.f32.mxu0 %v453
    %v455 = vand.u32 %v61, 4294901760
    %456 = vmatmul.mubr.f32.gmra.mrb[0].mxu0 %v455
    %v457 = vpop.f32.mrb[0].mxu0
    %v458 = vadd.f32 %v219, %v457
    %v459 = vpop.f32.mrb[0].mxu0
    %460 = vdwg.mxu0
    %461 = vmatprep.subr.mxu0 0.0
    %v462 = vand.u32 %v63, 4294901760
    %v463 = vsub.f32 %v63, %v462
    %464 = vmatpush1.msra.mxu0 %v463
    %465 = vmatprep.subr.mxu0 0.0
    %v466 = vand.u32 %v64, 4294901760
    %v467 = vsub.f32 %v64, %v466
    %468 = vmatpush1.msra.mxu0 %v467
    %469 = vmatprep.subr.mxu0 0.0
    %v470 = vand.u32 %v65, 4294901760
    %v471 = vsub.f32 %v65, %v470
    %472 = vmatpush1.msra.mxu0 %v471
    %473 = vmatprep.subr.mxu0 0.0
    %v474 = vand.u32 %v66, 4294901760
    %v475 = vsub.f32 %v66, %v474
    %476 = vmatpush1.msra.mxu0 %v475
    %477 = vmatprep.subr.mxu0 0.0
    %v478 = vand.u32 %v67, 4294901760
    %v479 = vsub.f32 %v67, %v478
    %480 = vmatpush1.msra.mxu0 %v479
    %481 = vmatprep.subr.mxu0 0.0
    %v482 = vand.u32 %v68, 4294901760
    %v483 = vsub.f32 %v68, %v482
    %484 = vmatpush1.msra.mxu0 %v483
    %485 = vmatprep.subr.mxu0 0.0
    %v486 = vand.u32 %v69, 4294901760
    %v487 = vsub.f32 %v69, %v486
    %488 = vmatpush1.msra.mxu0 %v487
    %489 = vmatprep.subr.mxu0 0.0
    %v490 = vand.u32 %v70, 4294901760
    %v491 = vsub.f32 %v70, %v490
    %492 = vmatpush1.msra.mxu0 %v491
    %493 = vmatprep.subr.mxu0 0.0
    %v494 = vand.u32 %v71, 4294901760
    %v495 = vsub.f32 %v71, %v494
    %496 = vmatpush1.msra.mxu0 %v495
    %497 = vmatprep.subr.mxu0 0.0
    %v498 = vand.u32 %v72, 4294901760
    %v499 = vsub.f32 %v72, %v498
    %500 = vmatpush1.msra.mxu0 %v499
    %501 = vmatprep.subr.mxu0 0.0
    %v502 = vand.u32 %v73, 4294901760
    %v503 = vsub.f32 %v73, %v502
    %504 = vmatpush1.msra.mxu0 %v503
    %505 = vmatprep.subr.mxu0 0.0
    %v506 = vand.u32 %v74, 4294901760
    %v507 = vsub.f32 %v74, %v506
    %508 = vmatpush1.msra.mxu0 %v507
    %509 = vmatprep.subr.mxu0 0.0
    %v510 = vand.u32 %v75, 4294901760
    %v511 = vsub.f32 %v75, %v510
    %512 = vmatpush1.msra.mxu0 %v511
    %513 = vmatprep.subr.mxu0 0.0
    %v514 = vand.u32 %v76, 4294901760
    %v515 = vsub.f32 %v76, %v514
    %516 = vmatpush1.msra.mxu0 %v515
    %517 = vmatprep.subr.mxu0 0.0
    %v518 = vand.u32 %v77, 4294901760
    %v519 = vsub.f32 %v77, %v518
    %520 = vmatpush1.msra.mxu0 %v519
    %521 = vmatprep.subr.mxu0 0.0
    %v522 = vand.u32 %v78, 4294901760
    %v523 = vsub.f32 %v78, %v522
    %524 = vmatpush1.msra.mxu0 %v523
    %525 = vmatprep.subr.mxu0 0.0
    %v526 = vand.u32 %v79, 4294901760
    %v527 = vsub.f32 %v79, %v526
    %528 = vmatpush1.msra.mxu0 %v527
    %529 = vmatprep.subr.mxu0 0.0
    %v530 = vand.u32 %v80, 4294901760
    %v531 = vsub.f32 %v80, %v530
    %532 = vmatpush1.msra.mxu0 %v531
    %533 = vmatprep.subr.mxu0 0.0
    %v534 = vand.u32 %v81, 4294901760
    %v535 = vsub.f32 %v81, %v534
    %536 = vmatpush1.msra.mxu0 %v535
    %537 = vmatprep.subr.mxu0 0.0
    %v538 = vand.u32 %v82, 4294901760
    %v539 = vsub.f32 %v82, %v538
    %540 = vmatpush1.msra.mxu0 %v539
    %541 = vmatprep.subr.mxu0 0.0
    %v542 = vand.u32 %v83, 4294901760
    %v543 = vsub.f32 %v83, %v542
    %544 = vmatpush1.msra.mxu0 %v543
    %545 = vmatprep.subr.mxu0 0.0
    %v546 = vand.u32 %v84, 4294901760
    %v547 = vsub.f32 %v84, %v546
    %548 = vmatpush1.msra.mxu0 %v547
    %549 = vmatprep.subr.mxu0 0.0
    %v550 = vand.u32 %v85, 4294901760
    %v551 = vsub.f32 %v85, %v550
    %552 = vmatpush1.msra.mxu0 %v551
    %553 = vmatprep.subr.mxu0 0.0
    %v554 = vand.u32 %v86, 4294901760
    %v555 = vsub.f32 %v86, %v554
    %556 = vmatpush1.msra.mxu0 %v555
    %557 = vmatprep.subr.mxu0 0.0
    %v558 = vand.u32 %v87, 4294901760
    %v559 = vsub.f32 %v87, %v558
    %560 = vmatpush1.msra.mxu0 %v559
    %561 = vmatprep.subr.mxu0 0.0
    %v562 = vand.u32 %v88, 4294901760
    %v563 = vsub.f32 %v88, %v562
    %564 = vmatpush1.msra.mxu0 %v563
    %565 = vmatprep.subr.mxu0 0.0
    %v566 = vand.u32 %v89, 4294901760
    %v567 = vsub.f32 %v89, %v566
    %568 = vmatpush1.msra.mxu0 %v567
    %569 = vmatprep.subr.mxu0 0.0
    %v570 = vand.u32 %v90, 4294901760
    %v571 = vsub.f32 %v90, %v570
    %572 = vmatpush1.msra.mxu0 %v571
    %573 = vmatprep.subr.mxu0 0.0
    %v574 = vand.u32 %v91, 4294901760
    %v575 = vsub.f32 %v91, %v574
    %576 = vmatpush1.msra.mxu0 %v575
    %577 = vmatprep.subr.mxu0 0.0
    %v578 = vand.u32 %v92, 4294901760
    %v579 = vsub.f32 %v92, %v578
    %580 = vmatpush1.msra.mxu0 %v579
    %581 = vmatprep.subr.mxu0 0.0
    %v582 = vand.u32 %v93, 4294901760
    %v583 = vsub.f32 %v93, %v582
    %584 = vmatpush1.msra.mxu0 %v583
    %585 = vmatprep.subr.mxu0 0.0
    %v586 = vand.u32 %v94, 4294901760
    %v587 = vsub.f32 %v94, %v586
    %588 = vmatpush1.msra.mxu0 %v587
    %v589 = vand.u32 %v60, 4294901760
    %v590 = vsub.f32 %v60, %v589
    %591 = vmatprep.mubr.f32.mxu0 %v590
    %v592 = vand.u32 %v59, 4294901760
    %v593 = vsub.f32 %v59, %v592
    %594 = vmatmul.mubr.f32.gmra.mrb[0].mxu0 %v593
    %v595 = vpop.f32.mrb[0].mxu0
    %v596 = vadd.f32 %v451, %v595
    %v597 = vpop.f32.mrb[0].mxu0
    %v598 = vand.u32 %v62, 4294901760
    %v599 = vsub.f32 %v62, %v598
    %600 = vmatprep.mubr.f32.mxu0 %v599
    %v601 = vand.u32 %v61, 4294901760
    %v602 = vsub.f32 %v61, %v601
    %603 = vmatmul.mubr.f32.gmra.mrb[0].mxu0 %v602
    %v604 = vpop.f32.mrb[0].mxu0
    %v605 = vadd.f32 %v458, %v604
    %v606 = vpop.f32.mrb[0].mxu0
    %607 = vdwg.mxu0
    %608 = vmatprep.subr.mxu0 0.0
    %v609 = vand.u32 %v63, 4294901760
    %610 = vmatpush1.msra.mxu0 %v609
    %611 = vmatprep.subr.mxu0 0.0
    %v612 = vand.u32 %v64, 4294901760
    %613 = vmatpush1.msra.mxu0 %v612
    %614 = vmatprep.subr.mxu0 0.0
    %v615 = vand.u32 %v65, 4294901760
    %616 = vmatpush1.msra.mxu0 %v615
    %617 = vmatprep.subr.mxu0 0.0
    %v618 = vand.u32 %v66, 4294901760
    %619 = vmatpush1.msra.mxu0 %v618
    %620 = vmatprep.subr.mxu0 0.0
    %v621 = vand.u32 %v67, 4294901760
    %622 = vmatpush1.msra.mxu0 %v621
    %623 = vmatprep.subr.mxu0 0.0
    %v624 = vand.u32 %v68, 4294901760
    %625 = vmatpush1.msra.mxu0 %v624
    %626 = vmatprep.subr.mxu0 0.0
    %v627 = vand.u32 %v69, 4294901760
    %628 = vmatpush1.msra.mxu0 %v627
    %629 = vmatprep.subr.mxu0 0.0
    %v630 = vand.u32 %v70, 4294901760
    %631 = vmatpush1.msra.mxu0 %v630
    %632 = vmatprep.subr.mxu0 0.0
    %v633 = vand.u32 %v71, 4294901760
    %634 = vmatpush1.msra.mxu0 %v633
    %635 = vmatprep.subr.mxu0 0.0
    %v636 = vand.u32 %v72, 4294901760
    %637 = vmatpush1.msra.mxu0 %v636
    %638 = vmatprep.subr.mxu0 0.0
    %v639 = vand.u32 %v73, 4294901760
    %640 = vmatpush1.msra.mxu0 %v639
    %641 = vmatprep.subr.mxu0 0.0
    %v642 = vand.u32 %v74, 4294901760
    %643 = vmatpush1.msra.mxu0 %v642
    %644 = vmatprep.subr.mxu0 0.0
    %v645 = vand.u32 %v75, 4294901760
    %646 = vmatpush1.msra.mxu0 %v645
    %647 = vmatprep.subr.mxu0 0.0
    %v648 = vand.u32 %v76, 4294901760
    %649 = vmatpush1.msra.mxu0 %v648
    %650 = vmatprep.subr.mxu0 0.0
    %v651 = vand.u32 %v77, 4294901760
    %652 = vmatpush1.msra.mxu0 %v651
    %653 = vmatprep.subr.mxu0 0.0
    %v654 = vand.u32 %v78, 4294901760
    %655 = vmatpush1.msra.mxu0 %v654
    %656 = vmatprep.subr.mxu0 0.0
    %v657 = vand.u32 %v79, 4294901760
    %658 = vmatpush1.msra.mxu0 %v657
    %659 = vmatprep.subr.mxu0 0.0
    %v660 = vand.u32 %v80, 4294901760
    %661 = vmatpush1.msra.mxu0 %v660
    %662 = vmatprep.subr.mxu0 0.0
    %v663 = vand.u32 %v81, 4294901760
    %664 = vmatpush1.msra.mxu0 %v663
    %665 = vmatprep.subr.mxu0 0.0
    %v666 = vand.u32 %v82, 4294901760
    %667 = vmatpush1.msra.mxu0 %v666
    %668 = vmatprep.subr.mxu0 0.0
    %v669 = vand.u32 %v83, 4294901760
    %670 = vmatpush1.msra.mxu0 %v669
    %671 = vmatprep.subr.mxu0 0.0
    %v672 = vand.u32 %v84, 4294901760
    %673 = vmatpush1.msra.mxu0 %v672
    %674 = vmatprep.subr.mxu0 0.0
    %v675 = vand.u32 %v85, 4294901760
    %676 = vmatpush1.msra.mxu0 %v675
    %677 = vmatprep.subr.mxu0 0.0
    %v678 = vand.u32 %v86, 4294901760
    %679 = vmatpush1.msra.mxu0 %v678
    %680 = vmatprep.subr.mxu0 0.0
    %v681 = vand.u32 %v87, 4294901760
    %682 = vmatpush1.msra.mxu0 %v681
    %683 = vmatprep.subr.mxu0 0.0
    %v684 = vand.u32 %v88, 4294901760
    %685 = vmatpush1.msra.mxu0 %v684
    %686 = vmatprep.subr.mxu0 0.0
    %v687 = vand.u32 %v89, 4294901760
    %688 = vmatpush1.msra.mxu0 %v687
    %689 = vmatprep.subr.mxu0 0.0
    %v690 = vand.u32 %v90, 4294901760
    %691 = vmatpush1.msra.mxu0 %v690
    %692 = vmatprep.subr.mxu0 0.0
    %v693 = vand.u32 %v91, 4294901760
    %694 = vmatpush1.msra.mxu0 %v693
    %695 = vmatprep.subr.mxu0 0.0
    %v696 = vand.u32 %v92, 4294901760
    %697 = vmatpush1.msra.mxu0 %v696
    %698 = vmatprep.subr.mxu0 0.0
    %v699 = vand.u32 %v93, 4294901760
    %700 = vmatpush1.msra.mxu0 %v699
    %701 = vmatprep.subr.mxu0 0.0
    %v702 = vand.u32 %v94, 4294901760
    %703 = vmatpush1.msra.mxu0 %v702
    %v704 = vand.u32 %v60, 4294901760
    %v705 = vsub.f32 %v60, %v704
    %v706 = vand.u32 %v705, 4294901760
    %707 = vmatprep.mubr.f32.mxu0 %v706
    %v708 = vand.u32 %v59, 4294901760
    %v709 = vsub.f32 %v59, %v708
    %v710 = vand.u32 %v709, 4294901760
    %711 = vmatmul.mubr.f32.gmra.mrb[0].mxu0 %v710
    %v712 = vpop.f32.mrb[0].mxu0
    %v713 = vadd.f32 %v596, %v712
    %v714 = vpop.f32.mrb[0].mxu0
    %v715 = vand.u32 %v62, 4294901760
    %v716 = vsub.f32 %v62, %v715
    %v717 = vand.u32 %v716, 4294901760
    %718 = vmatprep.mubr.f32.mxu0 %v717
    %v719 = vand.u32 %v61, 4294901760
    %v720 = vsub.f32 %v61, %v719
    %v721 = vand.u32 %v720, 4294901760
    %722 = vmatmul.mubr.f32.gmra.mrb[0].mxu0 %v721
    %v723 = vpop.f32.mrb[0].mxu0
    %v724 = vadd.f32 %v605, %v723
    %v725 = vpop.f32.mrb[0].mxu0
    %726 = vdwg.mxu0
    %727 = vmatprep.subr.mxu0 0.0
    %v728 = vand.u32 %v63, 4294901760
    %v729 = vsub.f32 %v63, %v728
    %v730 = vand.u32 %v729, 4294901760
    %731 = vmatpush1.msra.mxu0 %v730
    %732 = vmatprep.subr.mxu0 0.0
    %v733 = vand.u32 %v64, 4294901760
    %v734 = vsub.f32 %v64, %v733
    %v735 = vand.u32 %v734, 4294901760
    %736 = vmatpush1.msra.mxu0 %v735
    %737 = vmatprep.subr.mxu0 0.0
    %v738 = vand.u32 %v65, 4294901760
    %v739 = vsub.f32 %v65, %v738
    %v740 = vand.u32 %v739, 4294901760
    %741 = vmatpush1.msra.mxu0 %v740
    %742 = vmatprep.subr.mxu0 0.0
    %v743 = vand.u32 %v66, 4294901760
    %v744 = vsub.f32 %v66, %v743
    %v745 = vand.u32 %v744, 4294901760
    %746 = vmatpush1.msra.mxu0 %v745
    %747 = vmatprep.subr.mxu0 0.0
    %v748 = vand.u32 %v67, 4294901760
    %v749 = vsub.f32 %v67, %v748
    %v750 = vand.u32 %v749, 4294901760
    %751 = vmatpush1.msra.mxu0 %v750
    %752 = vmatprep.subr.mxu0 0.0
    %v753 = vand.u32 %v68, 4294901760
    %v754 = vsub.f32 %v68, %v753
    %v755 = vand.u32 %v754, 4294901760
    %756 = vmatpush1.msra.mxu0 %v755
    %757 = vmatprep.subr.mxu0 0.0
    %v758 = vand.u32 %v69, 4294901760
    %v759 = vsub.f32 %v69, %v758
    %v760 = vand.u32 %v759, 4294901760
    %761 = vmatpush1.msra.mxu0 %v760
    %762 = vmatprep.subr.mxu0 0.0
    %v763 = vand.u32 %v70, 4294901760
    %v764 = vsub.f32 %v70, %v763
    %v765 = vand.u32 %v764, 4294901760
    %766 = vmatpush1.msra.mxu0 %v765
    %767 = vmatprep.subr.mxu0 0.0
    %v768 = vand.u32 %v71, 4294901760
    %v769 = vsub.f32 %v71, %v768
    %v770 = vand.u32 %v769, 4294901760
    %771 = vmatpush1.msra.mxu0 %v770
    %772 = vmatprep.subr.mxu0 0.0
    %v773 = vand.u32 %v72, 4294901760
    %v774 = vsub.f32 %v72, %v773
    %v775 = vand.u32 %v774, 4294901760
    %776 = vmatpush1.msra.mxu0 %v775
    %777 = vmatprep.subr.mxu0 0.0
    %v778 = vand.u32 %v73, 4294901760
    %v779 = vsub.f32 %v73, %v778
    %v780 = vand.u32 %v779, 4294901760
    %781 = vmatpush1.msra.mxu0 %v780
    %782 = vmatprep.subr.mxu0 0.0
    %v783 = vand.u32 %v74, 4294901760
    %v784 = vsub.f32 %v74, %v783
    %v785 = vand.u32 %v784, 4294901760
    %786 = vmatpush1.msra.mxu0 %v785
    %787 = vmatprep.subr.mxu0 0.0
    %v788 = vand.u32 %v75, 4294901760
    %v789 = vsub.f32 %v75, %v788
    %v790 = vand.u32 %v789, 4294901760
    %791 = vmatpush1.msra.mxu0 %v790
    %792 = vmatprep.subr.mxu0 0.0
    %v793 = vand.u32 %v76, 4294901760
    %v794 = vsub.f32 %v76, %v793
    %v795 = vand.u32 %v794, 4294901760
    %796 = vmatpush1.msra.mxu0 %v795
    %797 = vmatprep.subr.mxu0 0.0
    %v798 = vand.u32 %v77, 4294901760
    %v799 = vsub.f32 %v77, %v798
    %v800 = vand.u32 %v799, 4294901760
    %801 = vmatpush1.msra.mxu0 %v800
    %802 = vmatprep.subr.mxu0 0.0
    %v803 = vand.u32 %v78, 4294901760
    %v804 = vsub.f32 %v78, %v803
    %v805 = vand.u32 %v804, 4294901760
    %806 = vmatpush1.msra.mxu0 %v805
    %807 = vmatprep.subr.mxu0 0.0
    %v808 = vand.u32 %v79, 4294901760
    %v809 = vsub.f32 %v79, %v808
    %v810 = vand.u32 %v809, 4294901760
    %811 = vmatpush1.msra.mxu0 %v810
    %812 = vmatprep.subr.mxu0 0.0
    %v813 = vand.u32 %v80, 4294901760
    %v814 = vsub.f32 %v80, %v813
    %v815 = vand.u32 %v814, 4294901760
    %816 = vmatpush1.msra.mxu0 %v815
    %817 = vmatprep.subr.mxu0 0.0
    %v818 = vand.u32 %v81, 4294901760
    %v819 = vsub.f32 %v81, %v818
    %v820 = vand.u32 %v819, 4294901760
    %821 = vmatpush1.msra.mxu0 %v820
    %822 = vmatprep.subr.mxu0 0.0
    %v823 = vand.u32 %v82, 4294901760
    %v824 = vsub.f32 %v82, %v823
    %v825 = vand.u32 %v824, 4294901760
    %826 = vmatpush1.msra.mxu0 %v825
    %827 = vmatprep.subr.mxu0 0.0
    %v828 = vand.u32 %v83, 4294901760
    %v829 = vsub.f32 %v83, %v828
    %v830 = vand.u32 %v829, 4294901760
    %831 = vmatpush1.msra.mxu0 %v830
    %832 = vmatprep.subr.mxu0 0.0
    %v833 = vand.u32 %v84, 4294901760
    %v834 = vsub.f32 %v84, %v833
    %v835 = vand.u32 %v834, 4294901760
    %836 = vmatpush1.msra.mxu0 %v835
    %837 = vmatprep.subr.mxu0 0.0
    %v838 = vand.u32 %v85, 4294901760
    %v839 = vsub.f32 %v85, %v838
    %v840 = vand.u32 %v839, 4294901760
    %841 = vmatpush1.msra.mxu0 %v840
    %842 = vmatprep.subr.mxu0 0.0
    %v843 = vand.u32 %v86, 4294901760
    %v844 = vsub.f32 %v86, %v843
    %v845 = vand.u32 %v844, 4294901760
    %846 = vmatpush1.msra.mxu0 %v845
    %847 = vmatprep.subr.mxu0 0.0
    %v848 = vand.u32 %v87, 4294901760
    %v849 = vsub.f32 %v87, %v848
    %v850 = vand.u32 %v849, 4294901760
    %851 = vmatpush1.msra.mxu0 %v850
    %852 = vmatprep.subr.mxu0 0.0
    %v853 = vand.u32 %v88, 4294901760
    %v854 = vsub.f32 %v88, %v853
    %v855 = vand.u32 %v854, 4294901760
    %856 = vmatpush1.msra.mxu0 %v855
    %857 = vmatprep.subr.mxu0 0.0
    %v858 = vand.u32 %v89, 4294901760
    %v859 = vsub.f32 %v89, %v858
    %v860 = vand.u32 %v859, 4294901760
    %861 = vmatpush1.msra.mxu0 %v860
    %862 = vmatprep.subr.mxu0 0.0
    %v863 = vand.u32 %v90, 4294901760
    %v864 = vsub.f32 %v90, %v863
    %v865 = vand.u32 %v864, 4294901760
    %866 = vmatpush1.msra.mxu0 %v865
    %867 = vmatprep.subr.mxu0 0.0
    %v868 = vand.u32 %v91, 4294901760
    %v869 = vsub.f32 %v91, %v868
    %v870 = vand.u32 %v869, 4294901760
    %871 = vmatpush1.msra.mxu0 %v870
    %872 = vmatprep.subr.mxu0 0.0
    %v873 = vand.u32 %v92, 4294901760
    %v874 = vsub.f32 %v92, %v873
    %v875 = vand.u32 %v874, 4294901760
    %876 = vmatpush1.msra.mxu0 %v875
    %877 = vmatprep.subr.mxu0 0.0
    %v878 = vand.u32 %v93, 4294901760
    %v879 = vsub.f32 %v93, %v878
    %v880 = vand.u32 %v879, 4294901760
    %881 = vmatpush1.msra.mxu0 %v880
    %882 = vmatprep.subr.mxu0 0.0
    %v883 = vand.u32 %v94, 4294901760
    %v884 = vsub.f32 %v94, %v883
    %v885 = vand.u32 %v884, 4294901760
    %886 = vmatpush1.msra.mxu0 %v885
    %v887 = vand.u32 %v60, 4294901760
    %888 = vmatprep.mubr.f32.mxu0 %v887
    %v889 = vand.u32 %v59, 4294901760
    %890 = vmatmul.mubr.f32.gmra.mrb[0].mxu0 %v889
    %v891 = vpop.f32.mrb[0].mxu0
    %v892 = vadd.f32 %v713, %v891
    %v893 = vpop.f32.mrb[0].mxu0
    %v894 = vand.u32 %v62, 4294901760
    %895 = vmatprep.mubr.f32.mxu0 %v894
    %v896 = vand.u32 %v61, 4294901760
    %897 = vmatmul.mubr.f32.gmra.mrb[0].mxu0 %v896
    %v898 = vpop.f32.mrb[0].mxu0
    %v899 = vadd.f32 %v724, %v898
    %v900 = vpop.f32.mrb[0].mxu0
    %901 = vdwg.mxu0
    %902 = vmatprep.subr.mxu0 0.0
    %v903 = vand.u32 %v63, 4294901760
    %904 = vmatpush1.msra.mxu0 %v903
    %905 = vmatprep.subr.mxu0 0.0
    %v906 = vand.u32 %v64, 4294901760
    %907 = vmatpush1.msra.mxu0 %v906
    %908 = vmatprep.subr.mxu0 0.0
    %v909 = vand.u32 %v65, 4294901760
    %910 = vmatpush1.msra.mxu0 %v909
    %911 = vmatprep.subr.mxu0 0.0
    %v912 = vand.u32 %v66, 4294901760
    %913 = vmatpush1.msra.mxu0 %v912
    %914 = vmatprep.subr.mxu0 0.0
    %v915 = vand.u32 %v67, 4294901760
    %916 = vmatpush1.msra.mxu0 %v915
    %917 = vmatprep.subr.mxu0 0.0
    %v918 = vand.u32 %v68, 4294901760
    %919 = vmatpush1.msra.mxu0 %v918
    %920 = vmatprep.subr.mxu0 0.0
    %v921 = vand.u32 %v69, 4294901760
    %922 = vmatpush1.msra.mxu0 %v921
    %923 = vmatprep.subr.mxu0 0.0
    %v924 = vand.u32 %v70, 4294901760
    %925 = vmatpush1.msra.mxu0 %v924
    %926 = vmatprep.subr.mxu0 0.0
    %v927 = vand.u32 %v71, 4294901760
    %928 = vmatpush1.msra.mxu0 %v927
    %929 = vmatprep.subr.mxu0 0.0
    %v930 = vand.u32 %v72, 4294901760
    %931 = vmatpush1.msra.mxu0 %v930
    %932 = vmatprep.subr.mxu0 0.0
    %v933 = vand.u32 %v73, 4294901760
    %934 = vmatpush1.msra.mxu0 %v933
    %935 = vmatprep.subr.mxu0 0.0
    %v936 = vand.u32 %v74, 4294901760
    %937 = vmatpush1.msra.mxu0 %v936
    %938 = vmatprep.subr.mxu0 0.0
    %v939 = vand.u32 %v75, 4294901760
    %940 = vmatpush1.msra.mxu0 %v939
    %941 = vmatprep.subr.mxu0 0.0
    %v942 = vand.u32 %v76, 4294901760
    %943 = vmatpush1.msra.mxu0 %v942
    %944 = vmatprep.subr.mxu0 0.0
    %v945 = vand.u32 %v77, 4294901760
    %946 = vmatpush1.msra.mxu0 %v945
    %947 = vmatprep.subr.mxu0 0.0
    %v948 = vand.u32 %v78, 4294901760
    %949 = vmatpush1.msra.mxu0 %v948
    %950 = vmatprep.subr.mxu0 0.0
    %v951 = vand.u32 %v79, 4294901760
    %952 = vmatpush1.msra.mxu0 %v951
    %953 = vmatprep.subr.mxu0 0.0
    %v954 = vand.u32 %v80, 4294901760
    %955 = vmatpush1.msra.mxu0 %v954
    %956 = vmatprep.subr.mxu0 0.0
    %v957 = vand.u32 %v81, 4294901760
    %958 = vmatpush1.msra.mxu0 %v957
    %959 = vmatprep.subr.mxu0 0.0
    %v960 = vand.u32 %v82, 4294901760
    %961 = vmatpush1.msra.mxu0 %v960
    %962 = vmatprep.subr.mxu0 0.0
    %v963 = vand.u32 %v83, 4294901760
    %964 = vmatpush1.msra.mxu0 %v963
    %965 = vmatprep.subr.mxu0 0.0
    %v966 = vand.u32 %v84, 4294901760
    %967 = vmatpush1.msra.mxu0 %v966
    %968 = vmatprep.subr.mxu0 0.0
    %v969 = vand.u32 %v85, 4294901760
    %970 = vmatpush1.msra.mxu0 %v969
    %971 = vmatprep.subr.mxu0 0.0
    %v972 = vand.u32 %v86, 4294901760
    %973 = vmatpush1.msra.mxu0 %v972
    %974 = vmatprep.subr.mxu0 0.0
    %v975 = vand.u32 %v87, 4294901760
    %976 = vmatpush1.msra.mxu0 %v975
    %977 = vmatprep.subr.mxu0 0.0
    %v978 = vand.u32 %v88, 4294901760
    %979 = vmatpush1.msra.mxu0 %v978
    %980 = vmatprep.subr.mxu0 0.0
    %v981 = vand.u32 %v89, 4294901760
    %982 = vmatpush1.msra.mxu0 %v981
    %983 = vmatprep.subr.mxu0 0.0
    %v984 = vand.u32 %v90, 4294901760
    %985 = vmatpush1.msra.mxu0 %v984
    %986 = vmatprep.subr.mxu0 0.0
    %v987 = vand.u32 %v91, 4294901760
    %988 = vmatpush1.msra.mxu0 %v987
    %989 = vmatprep.subr.mxu0 0.0
    %v990 = vand.u32 %v92, 4294901760
    %991 = vmatpush1.msra.mxu0 %v990
    %992 = vmatprep.subr.mxu0 0.0
    %v993 = vand.u32 %v93, 4294901760
    %994 = vmatpush1.msra.mxu0 %v993
    %995 = vmatprep.subr.mxu0 0.0
    %v996 = vand.u32 %v94, 4294901760
    %997 = vmatpush1.msra.mxu0 %v996
    %v998 = vand.u32 %v60, 4294901760
    %999 = vmatprep.mubr.f32.mxu0 %v998
    %v1000 = vand.u32 %v59, 4294901760
    %1001 = vmatmul.mubr.f32.gmra.mrb[0].mxu0 %v1000
    %v1002 = vpop.f32.mrb[0].mxu0
    %v1003 = vadd.f32 %v892, %v1002
    %v1004 = vpop.f32.mrb[0].mxu0
    %v1005 = vand.u32 %v62, 4294901760
    %1006 = vmatprep.mubr.f32.mxu0 %v1005
    %v1007 = vand.u32 %v61, 4294901760
    %1008 = vmatmul.mubr.f32.gmra.mrb[0].mxu0 %v1007
    %v1009 = vpop.f32.mrb[0].mxu0
    %v1010 = vadd.f32 %v899, %v1009
    %v1011 = vpop.f32.mrb[0].mxu0
    %1012 = vdwg.mxu0
    %1013 = vst [vmem:[#allocation5] sm:$0xff] %v1003
    %1014 = vst [vmem:[#allocation5 + $0x8] sm:$0xff] %v1010
    // Predicated region
    $region14: #{_forward_impl.1} parent=1 // pred_check
      _
    $region15: #{_forward_impl.1} parent=1 // pred_check_branch
      %1016 = sbr.rel (0) target = $region17
    $region16: #{_forward_impl.1} parent=1 // pred_region
      %s1018 = ssub.s32 256, 256
      %1019 = vsyncadd [#allocation4], %s1018
      %s1020 = sshll.u32 [#allocation5], 4
      %s1021 = int_to_ptr.vmem [resolvable:$true] %s1020
      %1026 = dma.vmem_to_hbm [thread:$0]  %s1021, 256, %s2, [#allocation4], 128, 128, 8
    $region17: #{_forward_impl.1} parent=1 // pred_fallthru
      _
    // Predicated region
    $region18: #{_forward_impl.1} parent=1 // pred_check
      _
    $region19: #{_forward_impl.1} parent=1 // pred_check_branch
      %1028 = sbr.rel (0) target = $region21
    $region20: #{_forward_impl.1} parent=1 // pred_region
      %1029 = dma.done [#allocation4], 256
    $region21: #{_forward_impl.1} parent=1 // pred_fallthru
      _
    %1030 = vsyncpa [#allocation3], 1
    %1031 = vsyncpa [#allocation4], 1

// kernel: _forward_impl.1
$region0: #{_forward_impl.1}
  #allocation0 [shape = 'u32[]', space=smem, size = 0x4, offset = 0x4, fixed_abs, tag = 'smem constant byte address 0x4 - core index']
  #allocation1 [shape = 'u32[144,128]{1,0:T(1,128)}', space=vmem, size = 0x12000, scoped, tag = 'internal scratch']
  %s0 = inlined_call_operand.vmem [shape: s32[16,2], index: 0, kind: input, shape index: {}]
  %s1 = inlined_call_operand.hbm [shape: f32[256,128], index: 1, kind: input, shape index: {}]
  %s2 = inlined_call_operand.hbm [shape: f32[16,128], index: 2, kind: output, shape index: {}]
  %s3 = sld [smem:[#allocation0]]
  $region22: #{_forward_impl.1} parent=0
    _
  %s5 = ssub.s32 1, %s3
  %s6 = scalar_select 0, %s5, %s3
  $region1: #{_forward_impl.1} parent=0
    #allocation2 [shape = 'u8[131072]{0}', space=vmem, size = 0x20000, scoped, tag = 'input window, operand 1, single buffered']
    #allocation3 [shape = 's32[1]{0}', space=sflag, size = 0x4, scoped, tag = 'scoped memory for _forward_impl.1']
    #allocation4 [shape = 's32[1]{0}', space=sflag, size = 0x4, scoped, tag = 'scoped memory for _forward_impl.1']
    #allocation5 [shape = 'u8[8192]{0}', space=vmem, size = 0x2000, scoped, tag = 'output window, operand 0, single buffered']
    %7 = vsyncpa [#allocation3], 0
    %8 = vsyncpa [#allocation4], 0
    // Predicated region
    $region2: #{_forward_impl.1} parent=1 // pred_check
      _
    $region3: #{_forward_impl.1} parent=1 // pred_check_branch
      %10 = sbr.rel (0) target = $region5
    $region4: #{_forward_impl.1} parent=1 // pred_region
      _
    $region5: #{_forward_impl.1} parent=1 // pred_fallthru
      _
    // Predicated region
    $region6: #{_forward_impl.1} parent=1 // pred_check
      _
    $region7: #{_forward_impl.1} parent=1 // pred_check_branch
      %12 = sbr.rel (0) target = $region9
    $region8: #{_forward_impl.1} parent=1 // pred_region
      %s14 = ssub.s32 4096, 4096
      %15 = vsyncadd [#allocation3], %s14
      %s16 = sshll.u32 [#allocation2], 4
      %s17 = int_to_ptr.vmem [resolvable:$true] %s16
      %22 = dma.hbm_to_vmem [thread:$0]  %s1, 4096, %s17, [#allocation3], 128, 128, 8
    $region9: #{_forward_impl.1} parent=1 // pred_fallthru
      _
    // Predicated region
    $region10: #{_forward_impl.1} parent=1 // pred_check
      _
    $region11: #{_forward_impl.1} parent=1 // pred_check_branch
      %24 = sbr.rel (0) target = $region13
    $region12: #{_forward_impl.1} parent=1 // pred_region
      %25 = dma.done [#allocation3], 4096
    $region13: #{_forward_impl.1} parent=1 // pred_fallthru
      _
    %v26 = vld [vmem:[%s0] sm:$0xff]
    %v27 = vld [vmem:[%s0 + $0x8] sm:$0xff]
    %v28 = vlaneseq
    %v29 = vand.u32 %v28, 127
    %v30 = vadd.s32 %v29, 128
    %31 = vset.pattern.permute.xlu0 0
    %32 = vperm.xlu0 %31, %v26
    %v33 = vpop.permute.xlu0 %32
    %34 = vset.pattern.permute.xlu0 0
    %35 = vperm.xlu0 %34, %v27
    %v36 = vpop.permute.xlu0 %35
    %vm37 = vcmp.eq.s32.totalorder %v33, %v29
    %vm38 = vcmp.eq.s32.totalorder %v33, %v30
    %vm39 = vcmp.eq.s32.totalorder %v36, %v29
    %vm40 = vcmp.eq.s32.totalorder %v36, %v30
    %41 = vset.pattern.permute.xlu0 1
    %42 = vperm.xlu0 %41, %v26
    %v43 = vpop.permute.xlu0 %42
    %44 = vset.pattern.permute.xlu0 1
    %45 = vperm.xlu0 %44, %v27
    %v46 = vpop.permute.xlu0 %45
    %vm47 = vcmp.eq.s32.totalorder %v43, %v29
    %vm48 = vcmp.eq.s32.totalorder %v43, %v30
    %vm49 = vcmp.eq.s32.totalorder %v46, %v29
    %vm50 = vcmp.eq.s32.totalorder %v46, %v30
    %vm51 = vmor %vm37, %vm47
    %vm52 = vmor %vm38, %vm48
    %vm53 = vmor %vm39, %vm49
    %vm54 = vmor %vm40, %vm50
    %v55 = vsel %vm51, 1, 0
    %v56 = vsel %vm52, 1, 0
    %v57 = vsel %vm53, 1, 0
    %v58 = vsel %vm54, 1, 0
    %v59 = vcvt.s32.f32 %v55
    %v60 = vcvt.s32.f32 %v56
    %v61 = vcvt.s32.f32 %v57
    %v62 = vcvt.s32.f32 %v58
    %v63 = vld [vmem:[#allocation2] sm:$0xff]
    %v64 = vld [vmem:[#allocation2 + $0x8] sm:$0xff]
    %v65 = vld [vmem:[#allocation2 + $0x10] sm:$0xff]
    %v66 = vld [vmem:[#allocation2 + $0x18] sm:$0xff]
    %v67 = vld [vmem:[#allocation2 + $0x20] sm:$0xff]
    %v68 = vld [vmem:[#allocation2 + $0x28] sm:$0xff]
    %v69 = vld [vmem:[#allocation2 + $0x30] sm:$0xff]
    %v70 = vld [vmem:[#allocation2 + $0x38] sm:$0xff]
    %v71 = vld [vmem:[#allocation2 + $0x40] sm:$0xff]
    %v72 = vld [vmem:[#allocation2 + $0x48] sm:$0xff]
    %v73 = vld [vmem:[#allocation2 + $0x50] sm:$0xff]
    %v74 = vld [vmem:[#allocation2 + $0x58] sm:$0xff]
    %v75 = vld [vmem:[#allocation2 + $0x60] sm:$0xff]
    %v76 = vld [vmem:[#allocation2 + $0x68] sm:$0xff]
    %v77 = vld [vmem:[#allocation2 + $0x70] sm:$0xff]
    %v78 = vld [vmem:[#allocation2 + $0x78] sm:$0xff]
    %v79 = vld [vmem:[#allocation2 + $0x80] sm:$0xff]
    %v80 = vld [vmem:[#allocation2 + $0x88] sm:$0xff]
    %v81 = vld [vmem:[#allocation2 + $0x90] sm:$0xff]
    %v82 = vld [vmem:[#allocation2 + $0x98] sm:$0xff]
    %v83 = vld [vmem:[#allocation2 + $0xa0] sm:$0xff]
    %v84 = vld [vmem:[#allocation2 + $0xa8] sm:$0xff]
    %v85 = vld [vmem:[#allocation2 + $0xb0] sm:$0xff]
    %v86 = vld [vmem:[#allocation2 + $0xb8] sm:$0xff]
    %v87 = vld [vmem:[#allocation2 + $0xc0] sm:$0xff]
    %v88 = vld [vmem:[#allocation2 + $0xc8] sm:$0xff]
    %v89 = vld [vmem:[#allocation2 + $0xd0] sm:$0xff]
    %v90 = vld [vmem:[#allocation2 + $0xd8] sm:$0xff]
    %v91 = vld [vmem:[#allocation2 + $0xe0] sm:$0xff]
    %v92 = vld [vmem:[#allocation2 + $0xe8] sm:$0xff]
    %v93 = vld [vmem:[#allocation2 + $0xf0] sm:$0xff]
    %v94 = vld [vmem:[#allocation2 + $0xf8] sm:$0xff]
    %95 = vmatprep.subr.mxu0 0.0
    %v96 = vand.u32 %v63, 4294901760
    %97 = vmatpush1.msra.mxu0 %v96
    %98 = vmatprep.subr.mxu0 0.0
    %v99 = vand.u32 %v64, 4294901760
    %100 = vmatpush1.msra.mxu0 %v99
    %101 = vmatprep.subr.mxu0 0.0
    %v102 = vand.u32 %v65, 4294901760
    %103 = vmatpush1.msra.mxu0 %v102
    %104 = vmatprep.subr.mxu0 0.0
    %v105 = vand.u32 %v66, 4294901760
    %106 = vmatpush1.msra.mxu0 %v105
    %107 = vmatprep.subr.mxu0 0.0
    %v108 = vand.u32 %v67, 4294901760
    %109 = vmatpush1.msra.mxu0 %v108
    %110 = vmatprep.subr.mxu0 0.0
    %v111 = vand.u32 %v68, 4294901760
    %112 = vmatpush1.msra.mxu0 %v111
    %113 = vmatprep.subr.mxu0 0.0
    %v114 = vand.u32 %v69, 4294901760
    %115 = vmatpush1.msra.mxu0 %v114
    %116 = vmatprep.subr.mxu0 0.0
    %v117 = vand.u32 %v70, 4294901760
    %118 = vmatpush1.msra.mxu0 %v117
    %119 = vmatprep.subr.mxu0 0.0
    %v120 = vand.u32 %v71, 4294901760
    %121 = vmatpush1.msra.mxu0 %v120
    %122 = vmatprep.subr.mxu0 0.0
    %v123 = vand.u32 %v72, 4294901760
    %124 = vmatpush1.msra.mxu0 %v123
    %125 = vmatprep.subr.mxu0 0.0
    %v126 = vand.u32 %v73, 4294901760
    %127 = vmatpush1.msra.mxu0 %v126
    %128 = vmatprep.subr.mxu0 0.0
    %v129 = vand.u32 %v74, 4294901760
    %130 = vmatpush1.msra.mxu0 %v129
    %131 = vmatprep.subr.mxu0 0.0
    %v132 = vand.u32 %v75, 4294901760
    %133 = vmatpush1.msra.mxu0 %v132
    %134 = vmatprep.subr.mxu0 0.0
    %v135 = vand.u32 %v76, 4294901760
    %136 = vmatpush1.msra.mxu0 %v135
    %137 = vmatprep.subr.mxu0 0.0
    %v138 = vand.u32 %v77, 4294901760
    %139 = vmatpush1.msra.mxu0 %v138
    %140 = vmatprep.subr.mxu0 0.0
    %v141 = vand.u32 %v78, 4294901760
    %142 = vmatpush1.msra.mxu0 %v141
    %143 = vmatprep.subr.mxu0 0.0
    %v144 = vand.u32 %v79, 4294901760
    %145 = vmatpush1.msra.mxu0 %v144
    %146 = vmatprep.subr.mxu0 0.0
    %v147 = vand.u32 %v80, 4294901760
    %148 = vmatpush1.msra.mxu0 %v147
    %149 = vmatprep.subr.mxu0 0.0
    %v150 = vand.u32 %v81, 4294901760
    %151 = vmatpush1.msra.mxu0 %v150
    %152 = vmatprep.subr.mxu0 0.0
    %v153 = vand.u32 %v82, 4294901760
    %154 = vmatpush1.msra.mxu0 %v153
    %155 = vmatprep.subr.mxu0 0.0
    %v156 = vand.u32 %v83, 4294901760
    %157 = vmatpush1.msra.mxu0 %v156
    %158 = vmatprep.subr.mxu0 0.0
    %v159 = vand.u32 %v84, 4294901760
    %160 = vmatpush1.msra.mxu0 %v159
    %161 = vmatprep.subr.mxu0 0.0
    %v162 = vand.u32 %v85, 4294901760
    %163 = vmatpush1.msra.mxu0 %v162
    %164 = vmatprep.subr.mxu0 0.0
    %v165 = vand.u32 %v86, 4294901760
    %166 = vmatpush1.msra.mxu0 %v165
    %167 = vmatprep.subr.mxu0 0.0
    %v168 = vand.u32 %v87, 4294901760
    %169 = vmatpush1.msra.mxu0 %v168
    %170 = vmatprep.subr.mxu0 0.0
    %v171 = vand.u32 %v88, 4294901760
    %172 = vmatpush1.msra.mxu0 %v171
    %173 = vmatprep.subr.mxu0 0.0
    %v174 = vand.u32 %v89, 4294901760
    %175 = vmatpush1.msra.mxu0 %v174
    %176 = vmatprep.subr.mxu0 0.0
    %v177 = vand.u32 %v90, 4294901760
    %178 = vmatpush1.msra.mxu0 %v177
    %179 = vmatprep.subr.mxu0 0.0
    %v180 = vand.u32 %v91, 4294901760
    %181 = vmatpush1.msra.mxu0 %v180
    %182 = vmatprep.subr.mxu0 0.0
    %v183 = vand.u32 %v92, 4294901760
    %184 = vmatpush1.msra.mxu0 %v183
    %185 = vmatprep.subr.mxu0 0.0
    %v186 = vand.u32 %v93, 4294901760
    %187 = vmatpush1.msra.mxu0 %v186
    %188 = vmatprep.subr.mxu0 0.0
    %v189 = vand.u32 %v94, 4294901760
    %190 = vmatpush1.msra.mxu0 %v189
    %v191 = vand.u32 %v60, 4294901760
    %v192 = vsub.f32 %v60, %v191
    %v193 = vand.u32 %v192, 4294901760
    %v194 = vsub.f32 %v192, %v193
    %v195 = vand.u32 %v194, 4294901760
    %196 = vmatprep.mubr.f32.mxu0 %v195
    %v197 = vand.u32 %v59, 4294901760
    %v198 = vsub.f32 %v59, %v197
    %v199 = vand.u32 %v198, 4294901760
    %v200 = vsub.f32 %v198, %v199
    %v201 = vand.u32 %v200, 4294901760
    %202 = vmatmul.mubr.f32.gmra.mrb[0].mxu0 %v201
    %v203 = vpop.f32.mrb[0].mxu0
    %v204 = vadd.f32 0.0, %v203
    %v205 = vpop.f32.mrb[0].mxu0
    %v206 = vand.u32 %v62, 4294901760
    %v207 = vsub.f32 %v62, %v206
    %v208 = vand.u32 %v207, 4294901760
    %v209 = vsub.f32 %v207, %v208
    %v210 = vand.u32 %v209, 4294901760
    %211 = vmatprep.mubr.f32.mxu0 %v210
    %v212 = vand.u32 %v61, 4294901760
    %v213 = vsub.f32 %v61, %v212
    %v214 = vand.u32 %v213, 4294901760
    %v215 = vsub.f32 %v213, %v214
    %v216 = vand.u32 %v215, 4294901760
    %217 = vmatmul.mubr.f32.gmra.mrb[0].mxu0 %v216
    %v218 = vpop.f32.mrb[0].mxu0
    %v219 = vadd.f32 0.0, %v218
    %v220 = vpop.f32.mrb[0].mxu0
    %221 = vdwg.mxu0
    %222 = vmatprep.subr.mxu0 0.0
    %v223 = vand.u32 %v63, 4294901760
    %v224 = vsub.f32 %v63, %v223
    %v225 = vand.u32 %v224, 4294901760
    %v226 = vsub.f32 %v224, %v225
    %v227 = vand.u32 %v226, 4294901760
    %228 = vmatpush1.msra.mxu0 %v227
    %229 = vmatprep.subr.mxu0 0.0
    %v230 = vand.u32 %v64, 4294901760
    %v231 = vsub.f32 %v64, %v230
    %v232 = vand.u32 %v231, 4294901760
    %v233 = vsub.f32 %v231, %v232
    %v234 = vand.u32 %v233, 4294901760
    %235 = vmatpush1.msra.mxu0 %v234
    %236 = vmatprep.subr.mxu0 0.0
    %v237 = vand.u32 %v65, 4294901760
    %v238 = vsub.f32 %v65, %v237
    %v239 = vand.u32 %v238, 4294901760
    %v240 = vsub.f32 %v238, %v239
    %v241 = vand.u32 %v240, 4294901760
    %242 = vmatpush1.msra.mxu0 %v241
    %243 = vmatprep.subr.mxu0 0.0
    %v244 = vand.u32 %v66, 4294901760
    %v245 = vsub.f32 %v66, %v244
    %v246 = vand.u32 %v245, 4294901760
    %v247 = vsub.f32 %v245, %v246
    %v248 = vand.u32 %v247, 4294901760
    %249 = vmatpush1.msra.mxu0 %v248
    %250 = vmatprep.subr.mxu0 0.0
    %v251 = vand.u32 %v67, 4294901760
    %v252 = vsub.f32 %v67, %v251
    %v253 = vand.u32 %v252, 4294901760
    %v254 = vsub.f32 %v252, %v253
    %v255 = vand.u32 %v254, 4294901760
    %256 = vmatpush1.msra.mxu0 %v255
    %257 = vmatprep.subr.mxu0 0.0
    %v258 = vand.u32 %v68, 4294901760
    %v259 = vsub.f32 %v68, %v258
    %v260 = vand.u32 %v259, 4294901760
    %v261 = vsub.f32 %v259, %v260
    %v262 = vand.u32 %v261, 4294901760
    %263 = vmatpush1.msra.mxu0 %v262
    %264 = vmatprep.subr.mxu0 0.0
    %v265 = vand.u32 %v69, 4294901760
    %v266 = vsub.f32 %v69, %v265
    %v267 = vand.u32 %v266, 4294901760
    %v268 = vsub.f32 %v266, %v267
    %v269 = vand.u32 %v268, 4294901760
    %270 = vmatpush1.msra.mxu0 %v269
    %271 = vmatprep.subr.mxu0 0.0
    %v272 = vand.u32 %v70, 4294901760
    %v273 = vsub.f32 %v70, %v272
    %v274 = vand.u32 %v273, 4294901760
    %v275 = vsub.f32 %v273, %v274
    %v276 = vand.u32 %v275, 4294901760
    %277 = vmatpush1.msra.mxu0 %v276
    %278 = vmatprep.subr.mxu0 0.0
    %v279 = vand.u32 %v71, 4294901760
    %v280 = vsub.f32 %v71, %v279
    %v281 = vand.u32 %v280, 4294901760
    %v282 = vsub.f32 %v280, %v281
    %v283 = vand.u32 %v282, 4294901760
    %284 = vmatpush1.msra.mxu0 %v283
    %285 = vmatprep.subr.mxu0 0.0
    %v286 = vand.u32 %v72, 4294901760
    %v287 = vsub.f32 %v72, %v286
    %v288 = vand.u32 %v287, 4294901760
    %v289 = vsub.f32 %v287, %v288
    %v290 = vand.u32 %v289, 4294901760
    %291 = vmatpush1.msra.mxu0 %v290
    %292 = vmatprep.subr.mxu0 0.0
    %v293 = vand.u32 %v73, 4294901760
    %v294 = vsub.f32 %v73, %v293
    %v295 = vand.u32 %v294, 4294901760
    %v296 = vsub.f32 %v294, %v295
    %v297 = vand.u32 %v296, 4294901760
    %298 = vmatpush1.msra.mxu0 %v297
    %299 = vmatprep.subr.mxu0 0.0
    %v300 = vand.u32 %v74, 4294901760
    %v301 = vsub.f32 %v74, %v300
    %v302 = vand.u32 %v301, 4294901760
    %v303 = vsub.f32 %v301, %v302
    %v304 = vand.u32 %v303, 4294901760
    %305 = vmatpush1.msra.mxu0 %v304
    %306 = vmatprep.subr.mxu0 0.0
    %v307 = vand.u32 %v75, 4294901760
    %v308 = vsub.f32 %v75, %v307
    %v309 = vand.u32 %v308, 4294901760
    %v310 = vsub.f32 %v308, %v309
    %v311 = vand.u32 %v310, 4294901760
    %312 = vmatpush1.msra.mxu0 %v311
    %313 = vmatprep.subr.mxu0 0.0
    %v314 = vand.u32 %v76, 4294901760
    %v315 = vsub.f32 %v76, %v314
    %v316 = vand.u32 %v315, 4294901760
    %v317 = vsub.f32 %v315, %v316
    %v318 = vand.u32 %v317, 4294901760
    %319 = vmatpush1.msra.mxu0 %v318
    %320 = vmatprep.subr.mxu0 0.0
    %v321 = vand.u32 %v77, 4294901760
    %v322 = vsub.f32 %v77, %v321
    %v323 = vand.u32 %v322, 4294901760
    %v324 = vsub.f32 %v322, %v323
    %v325 = vand.u32 %v324, 4294901760
    %326 = vmatpush1.msra.mxu0 %v325
    %327 = vmatprep.subr.mxu0 0.0
    %v328 = vand.u32 %v78, 4294901760
    %v329 = vsub.f32 %v78, %v328
    %v330 = vand.u32 %v329, 4294901760
    %v331 = vsub.f32 %v329, %v330
    %v332 = vand.u32 %v331, 4294901760
    %333 = vmatpush1.msra.mxu0 %v332
    %334 = vmatprep.subr.mxu0 0.0
    %v335 = vand.u32 %v79, 4294901760
    %v336 = vsub.f32 %v79, %v335
    %v337 = vand.u32 %v336, 4294901760
    %v338 = vsub.f32 %v336, %v337
    %v339 = vand.u32 %v338, 4294901760
    %340 = vmatpush1.msra.mxu0 %v339
    %341 = vmatprep.subr.mxu0 0.0
    %v342 = vand.u32 %v80, 4294901760
    %v343 = vsub.f32 %v80, %v342
    %v344 = vand.u32 %v343, 4294901760
    %v345 = vsub.f32 %v343, %v344
    %v346 = vand.u32 %v345, 4294901760
    %347 = vmatpush1.msra.mxu0 %v346
    %348 = vmatprep.subr.mxu0 0.0
    %v349 = vand.u32 %v81, 4294901760
    %v350 = vsub.f32 %v81, %v349
    %v351 = vand.u32 %v350, 4294901760
    %v352 = vsub.f32 %v350, %v351
    %v353 = vand.u32 %v352, 4294901760
    %354 = vmatpush1.msra.mxu0 %v353
    %355 = vmatprep.subr.mxu0 0.0
    %v356 = vand.u32 %v82, 4294901760
    %v357 = vsub.f32 %v82, %v356
    %v358 = vand.u32 %v357, 4294901760
    %v359 = vsub.f32 %v357, %v358
    %v360 = vand.u32 %v359, 4294901760
    %361 = vmatpush1.msra.mxu0 %v360
    %362 = vmatprep.subr.mxu0 0.0
    %v363 = vand.u32 %v83, 4294901760
    %v364 = vsub.f32 %v83, %v363
    %v365 = vand.u32 %v364, 4294901760
    %v366 = vsub.f32 %v364, %v365
    %v367 = vand.u32 %v366, 4294901760
    %368 = vmatpush1.msra.mxu0 %v367
    %369 = vmatprep.subr.mxu0 0.0
    %v370 = vand.u32 %v84, 4294901760
    %v371 = vsub.f32 %v84, %v370
    %v372 = vand.u32 %v371, 4294901760
    %v373 = vsub.f32 %v371, %v372
    %v374 = vand.u32 %v373, 4294901760
    %375 = vmatpush1.msra.mxu0 %v374
    %376 = vmatprep.subr.mxu0 0.0
    %v377 = vand.u32 %v85, 4294901760
    %v378 = vsub.f32 %v85, %v377
    %v379 = vand.u32 %v378, 4294901760
    %v380 = vsub.f32 %v378, %v379
    %v381 = vand.u32 %v380, 4294901760
    %382 = vmatpush1.msra.mxu0 %v381
    %383 = vmatprep.subr.mxu0 0.0
    %v384 = vand.u32 %v86, 4294901760
    %v385 = vsub.f32 %v86, %v384
    %v386 = vand.u32 %v385, 4294901760
    %v387 = vsub.f32 %v385, %v386
    %v388 = vand.u32 %v387, 4294901760
    %389 = vmatpush1.msra.mxu0 %v388
    %390 = vmatprep.subr.mxu0 0.0
    %v391 = vand.u32 %v87, 4294901760
    %v392 = vsub.f32 %v87, %v391
    %v393 = vand.u32 %v392, 4294901760
    %v394 = vsub.f32 %v392, %v393
    %v395 = vand.u32 %v394, 4294901760
    %396 = vmatpush1.msra.mxu0 %v395
    %397 = vmatprep.subr.mxu0 0.0
    %v398 = vand.u32 %v88, 4294901760
    %v399 = vsub.f32 %v88, %v398
    %v400 = vand.u32 %v399, 4294901760
    %v401 = vsub.f32 %v399, %v400
    %v402 = vand.u32 %v401, 4294901760
    %403 = vmatpush1.msra.mxu0 %v402
    %404 = vmatprep.subr.mxu0 0.0
    %v405 = vand.u32 %v89, 4294901760
    %v406 = vsub.f32 %v89, %v405
    %v407 = vand.u32 %v406, 4294901760
    %v408 = vsub.f32 %v406, %v407
    %v409 = vand.u32 %v408, 4294901760
    %410 = vmatpush1.msra.mxu0 %v409
    %411 = vmatprep.subr.mxu0 0.0
    %v412 = vand.u32 %v90, 4294901760
    %v413 = vsub.f32 %v90, %v412
    %v414 = vand.u32 %v413, 4294901760
    %v415 = vsub.f32 %v413, %v414
    %v416 = vand.u32 %v415, 4294901760
    %417 = vmatpush1.msra.mxu0 %v416
    %418 = vmatprep.subr.mxu0 0.0
    %v419 = vand.u32 %v91, 4294901760
    %v420 = vsub.f32 %v91, %v419
    %v421 = vand.u32 %v420, 4294901760
    %v422 = vsub.f32 %v420, %v421
    %v423 = vand.u32 %v422, 4294901760
    %424 = vmatpush1.msra.mxu0 %v423
    %425 = vmatprep.subr.mxu0 0.0
    %v426 = vand.u32 %v92, 4294901760
    %v427 = vsub.f32 %v92, %v426
    %v428 = vand.u32 %v427, 4294901760
    %v429 = vsub.f32 %v427, %v428
    %v430 = vand.u32 %v429, 4294901760
    %431 = vmatpush1.msra.mxu0 %v430
    %432 = vmatprep.subr.mxu0 0.0
    %v433 = vand.u32 %v93, 4294901760
    %v434 = vsub.f32 %v93, %v433
    %v435 = vand.u32 %v434, 4294901760
    %v436 = vsub.f32 %v434, %v435
    %v437 = vand.u32 %v436, 4294901760
    %438 = vmatpush1.msra.mxu0 %v437
    %439 = vmatprep.subr.mxu0 0.0
    %v440 = vand.u32 %v94, 4294901760
    %v441 = vsub.f32 %v94, %v440
    %v442 = vand.u32 %v441, 4294901760
    %v443 = vsub.f32 %v441, %v442
    %v444 = vand.u32 %v443, 4294901760
    %445 = vmatpush1.msra.mxu0 %v444
    %v446 = vand.u32 %v60, 4294901760
    %447 = vmatprep.mubr.f32.mxu0 %v446
    %v448 = vand.u32 %v59, 4294901760
    %449 = vmatmul.mubr.f32.gmra.mrb[0].mxu0 %v448
    %v450 = vpop.f32.mrb[0].mxu0
    %v451 = vadd.f32 %v204, %v450
    %v452 = vpop.f32.mrb[0].mxu0
    %v453 = vand.u32 %v62, 4294901760
    %454 = vmatprep.mubr.f32.mxu0 %v453
    %v455 = vand.u32 %v61, 4294901760
    %456 = vmatmul.mubr.f32.gmra.mrb[0].mxu0 %v455
    %v457 = vpop.f32.mrb[0].mxu0
    %v458 = vadd.f32 %v219, %v457
    %v459 = vpop.f32.mrb[0].mxu0
    %460 = vdwg.mxu0
    %461 = vmatprep.subr.mxu0 0.0
    %v462 = vand.u32 %v63, 4294901760
    %v463 = vsub.f32 %v63, %v462
    %464 = vmatpush1.msra.mxu0 %v463
    %465 = vmatprep.subr.mxu0 0.0
    %v466 = vand.u32 %v64, 4294901760
    %v467 = vsub.f32 %v64, %v466
    %468 = vmatpush1.msra.mxu0 %v467
    %469 = vmatprep.subr.mxu0 0.0
    %v470 = vand.u32 %v65, 4294901760
    %v471 = vsub.f32 %v65, %v470
    %472 = vmatpush1.msra.mxu0 %v471
    %473 = vmatprep.subr.mxu0 0.0
    %v474 = vand.u32 %v66, 4294901760
    %v475 = vsub.f32 %v66, %v474
    %476 = vmatpush1.msra.mxu0 %v475
    %477 = vmatprep.subr.mxu0 0.0
    %v478 = vand.u32 %v67, 4294901760
    %v479 = vsub.f32 %v67, %v478
    %480 = vmatpush1.msra.mxu0 %v479
    %481 = vmatprep.subr.mxu0 0.0
    %v482 = vand.u32 %v68, 4294901760
    %v483 = vsub.f32 %v68, %v482
    %484 = vmatpush1.msra.mxu0 %v483
    %485 = vmatprep.subr.mxu0 0.0
    %v486 = vand.u32 %v69, 4294901760
    %v487 = vsub.f32 %v69, %v486
    %488 = vmatpush1.msra.mxu0 %v487
    %489 = vmatprep.subr.mxu0 0.0
    %v490 = vand.u32 %v70, 4294901760
    %v491 = vsub.f32 %v70, %v490
    %492 = vmatpush1.msra.mxu0 %v491
    %493 = vmatprep.subr.mxu0 0.0
    %v494 = vand.u32 %v71, 4294901760
    %v495 = vsub.f32 %v71, %v494
    %496 = vmatpush1.msra.mxu0 %v495
    %497 = vmatprep.subr.mxu0 0.0
    %v498 = vand.u32 %v72, 4294901760
    %v499 = vsub.f32 %v72, %v498
    %500 = vmatpush1.msra.mxu0 %v499
    %501 = vmatprep.subr.mxu0 0.0
    %v502 = vand.u32 %v73, 4294901760
    %v503 = vsub.f32 %v73, %v502
    %504 = vmatpush1.msra.mxu0 %v503
    %505 = vmatprep.subr.mxu0 0.0
    %v506 = vand.u32 %v74, 4294901760
    %v507 = vsub.f32 %v74, %v506
    %508 = vmatpush1.msra.mxu0 %v507
    %509 = vmatprep.subr.mxu0 0.0
    %v510 = vand.u32 %v75, 4294901760
    %v511 = vsub.f32 %v75, %v510
    %512 = vmatpush1.msra.mxu0 %v511
    %513 = vmatprep.subr.mxu0 0.0
    %v514 = vand.u32 %v76, 4294901760
    %v515 = vsub.f32 %v76, %v514
    %516 = vmatpush1.msra.mxu0 %v515
    %517 = vmatprep.subr.mxu0 0.0
    %v518 = vand.u32 %v77, 4294901760
    %v519 = vsub.f32 %v77, %v518
    %520 = vmatpush1.msra.mxu0 %v519
    %521 = vmatprep.subr.mxu0 0.0
    %v522 = vand.u32 %v78, 4294901760
    %v523 = vsub.f32 %v78, %v522
    %524 = vmatpush1.msra.mxu0 %v523
    %525 = vmatprep.subr.mxu0 0.0
    %v526 = vand.u32 %v79, 4294901760
    %v527 = vsub.f32 %v79, %v526
    %528 = vmatpush1.msra.mxu0 %v527
    %529 = vmatprep.subr.mxu0 0.0
    %v530 = vand.u32 %v80, 4294901760
    %v531 = vsub.f32 %v80, %v530
    %532 = vmatpush1.msra.mxu0 %v531
    %533 = vmatprep.subr.mxu0 0.0
    %v534 = vand.u32 %v81, 4294901760
    %v535 = vsub.f32 %v81, %v534
    %536 = vmatpush1.msra.mxu0 %v535
    %537 = vmatprep.subr.mxu0 0.0
    %v538 = vand.u32 %v82, 4294901760
    %v539 = vsub.f32 %v82, %v538
    %540 = vmatpush1.msra.mxu0 %v539
    %541 = vmatprep.subr.mxu0 0.0
    %v542 = vand.u32 %v83, 4294901760
    %v543 = vsub.f32 %v83, %v542
    %544 = vmatpush1.msra.mxu0 %v543
    %545 = vmatprep.subr.mxu0 0.0
    %v546 = vand.u32 %v84, 4294901760
    %v547 = vsub.f32 %v84, %v546
    %548 = vmatpush1.msra.mxu0 %v547
    %549 = vmatprep.subr.mxu0 0.0
    %v550 = vand.u32 %v85, 4294901760
    %v551 = vsub.f32 %v85, %v550
    %552 = vmatpush1.msra.mxu0 %v551
    %553 = vmatprep.subr.mxu0 0.0
    %v554 = vand.u32 %v86, 4294901760
    %v555 = vsub.f32 %v86, %v554
    %556 = vmatpush1.msra.mxu0 %v555
    %557 = vmatprep.subr.mxu0 0.0
    %v558 = vand.u32 %v87, 4294901760
    %v559 = vsub.f32 %v87, %v558
    %560 = vmatpush1.msra.mxu0 %v559
    %561 = vmatprep.subr.mxu0 0.0
    %v562 = vand.u32 %v88, 4294901760
    %v563 = vsub.f32 %v88, %v562
    %564 = vmatpush1.msra.mxu0 %v563
    %565 = vmatprep.subr.mxu0 0.0
    %v566 = vand.u32 %v89, 4294901760
    %v567 = vsub.f32 %v89, %v566
    %568 = vmatpush1.msra.mxu0 %v567
    %569 = vmatprep.subr.mxu0 0.0
    %v570 = vand.u32 %v90, 4294901760
    %v571 = vsub.f32 %v90, %v570
    %572 = vmatpush1.msra.mxu0 %v571
    %573 = vmatprep.subr.mxu0 0.0
    %v574 = vand.u32 %v91, 4294901760
    %v575 = vsub.f32 %v91, %v574
    %576 = vmatpush1.msra.mxu0 %v575
    %577 = vmatprep.subr.mxu0 0.0
    %v578 = vand.u32 %v92, 4294901760
    %v579 = vsub.f32 %v92, %v578
    %580 = vmatpush1.msra.mxu0 %v579
    %581 = vmatprep.subr.mxu0 0.0
    %v582 = vand.u32 %v93, 4294901760
    %v583 = vsub.f32 %v93, %v582
    %584 = vmatpush1.msra.mxu0 %v583
    %585 = vmatprep.subr.mxu0 0.0
    %v586 = vand.u32 %v94, 4294901760
    %v587 = vsub.f32 %v94, %v586
    %588 = vmatpush1.msra.mxu0 %v587
    %v589 = vand.u32 %v60, 4294901760
    %v590 = vsub.f32 %v60, %v589
    %591 = vmatprep.mubr.f32.mxu0 %v590
    %v592 = vand.u32 %v59, 4294901760
    %v593 = vsub.f32 %v59, %v592
    %594 = vmatmul.mubr.f32.gmra.mrb[0].mxu0 %v593
    %v595 = vpop.f32.mrb[0].mxu0
    %v596 = vadd.f32 %v451, %v595
    %v597 = vpop.f32.mrb[0].mxu0
    %v598 = vand.u32 %v62, 4294901760
    %v599 = vsub.f32 %v62, %v598
    %600 = vmatprep.mubr.f32.mxu0 %v599
    %v601 = vand.u32 %v61, 4294901760
    %v602 = vsub.f32 %v61, %v601
    %603 = vmatmul.mubr.f32.gmra.mrb[0].mxu0 %v602
    %v604 = vpop.f32.mrb[0].mxu0
    %v605 = vadd.f32 %v458, %v604
    %v606 = vpop.f32.mrb[0].mxu0
    %607 = vdwg.mxu0
    %608 = vmatprep.subr.mxu0 0.0
    %v609 = vand.u32 %v63, 4294901760
    %610 = vmatpush1.msra.mxu0 %v609
    %611 = vmatprep.subr.mxu0 0.0
    %v612 = vand.u32 %v64, 4294901760
    %613 = vmatpush1.msra.mxu0 %v612
    %614 = vmatprep.subr.mxu0 0.0
    %v615 = vand.u32 %v65, 4294901760
    %616 = vmatpush1.msra.mxu0 %v615
    %617 = vmatprep.subr.mxu0 0.0
    %v618 = vand.u32 %v66, 4294901760
    %619 = vmatpush1.msra.mxu0 %v618
    %620 = vmatprep.subr.mxu0 0.0
    %v621 = vand.u32 %v67, 4294901760
    %622 = vmatpush1.msra.mxu0 %v621
    %623 = vmatprep.subr.mxu0 0.0
    %v624 = vand.u32 %v68, 4294901760
    %625 = vmatpush1.msra.mxu0 %v624
    %626 = vmatprep.subr.mxu0 0.0
    %v627 = vand.u32 %v69, 4294901760
    %628 = vmatpush1.msra.mxu0 %v627
    %629 = vmatprep.subr.mxu0 0.0
    %v630 = vand.u32 %v70, 4294901760
    %631 = vmatpush1.msra.mxu0 %v630
    %632 = vmatprep.subr.mxu0 0.0
    %v633 = vand.u32 %v71, 4294901760
    %634 = vmatpush1.msra.mxu0 %v633
    %635 = vmatprep.subr.mxu0 0.0
    %v636 = vand.u32 %v72, 4294901760
    %637 = vmatpush1.msra.mxu0 %v636
    %638 = vmatprep.subr.mxu0 0.0
    %v639 = vand.u32 %v73, 4294901760
    %640 = vmatpush1.msra.mxu0 %v639
    %641 = vmatprep.subr.mxu0 0.0
    %v642 = vand.u32 %v74, 4294901760
    %643 = vmatpush1.msra.mxu0 %v642
    %644 = vmatprep.subr.mxu0 0.0
    %v645 = vand.u32 %v75, 4294901760
    %646 = vmatpush1.msra.mxu0 %v645
    %647 = vmatprep.subr.mxu0 0.0
    %v648 = vand.u32 %v76, 4294901760
    %649 = vmatpush1.msra.mxu0 %v648
    %650 = vmatprep.subr.mxu0 0.0
    %v651 = vand.u32 %v77, 4294901760
    %652 = vmatpush1.msra.mxu0 %v651
    %653 = vmatprep.subr.mxu0 0.0
    %v654 = vand.u32 %v78, 4294901760
    %655 = vmatpush1.msra.mxu0 %v654
    %656 = vmatprep.subr.mxu0 0.0
    %v657 = vand.u32 %v79, 4294901760
    %658 = vmatpush1.msra.mxu0 %v657
    %659 = vmatprep.subr.mxu0 0.0
    %v660 = vand.u32 %v80, 4294901760
    %661 = vmatpush1.msra.mxu0 %v660
    %662 = vmatprep.subr.mxu0 0.0
    %v663 = vand.u32 %v81, 4294901760
    %664 = vmatpush1.msra.mxu0 %v663
    %665 = vmatprep.subr.mxu0 0.0
    %v666 = vand.u32 %v82, 4294901760
    %667 = vmatpush1.msra.mxu0 %v666
    %668 = vmatprep.subr.mxu0 0.0
    %v669 = vand.u32 %v83, 4294901760
    %670 = vmatpush1.msra.mxu0 %v669
    %671 = vmatprep.subr.mxu0 0.0
    %v672 = vand.u32 %v84, 4294901760
    %673 = vmatpush1.msra.mxu0 %v672
    %674 = vmatprep.subr.mxu0 0.0
    %v675 = vand.u32 %v85, 4294901760
    %676 = vmatpush1.msra.mxu0 %v675
    %677 = vmatprep.subr.mxu0 0.0
    %v678 = vand.u32 %v86, 4294901760
    %679 = vmatpush1.msra.mxu0 %v678
    %680 = vmatprep.subr.mxu0 0.0
    %v681 = vand.u32 %v87, 4294901760
    %682 = vmatpush1.msra.mxu0 %v681
    %683 = vmatprep.subr.mxu0 0.0
    %v684 = vand.u32 %v88, 4294901760
    %685 = vmatpush1.msra.mxu0 %v684
    %686 = vmatprep.subr.mxu0 0.0
    %v687 = vand.u32 %v89, 4294901760
    %688 = vmatpush1.msra.mxu0 %v687
    %689 = vmatprep.subr.mxu0 0.0
    %v690 = vand.u32 %v90, 4294901760
    %691 = vmatpush1.msra.mxu0 %v690
    %692 = vmatprep.subr.mxu0 0.0
    %v693 = vand.u32 %v91, 4294901760
    %694 = vmatpush1.msra.mxu0 %v693
    %695 = vmatprep.subr.mxu0 0.0
    %v696 = vand.u32 %v92, 4294901760
    %697 = vmatpush1.msra.mxu0 %v696
    %698 = vmatprep.subr.mxu0 0.0
    %v699 = vand.u32 %v93, 4294901760
    %700 = vmatpush1.msra.mxu0 %v699
    %701 = vmatprep.subr.mxu0 0.0
    %v702 = vand.u32 %v94, 4294901760
    %703 = vmatpush1.msra.mxu0 %v702
    %v704 = vand.u32 %v60, 4294901760
    %v705 = vsub.f32 %v60, %v704
    %v706 = vand.u32 %v705, 4294901760
    %707 = vmatprep.mubr.f32.mxu0 %v706
    %v708 = vand.u32 %v59, 4294901760
    %v709 = vsub.f32 %v59, %v708
    %v710 = vand.u32 %v709, 4294901760
    %711 = vmatmul.mubr.f32.gmra.mrb[0].mxu0 %v710
    %v712 = vpop.f32.mrb[0].mxu0
    %v713 = vadd.f32 %v596, %v712
    %v714 = vpop.f32.mrb[0].mxu0
    %v715 = vand.u32 %v62, 4294901760
    %v716 = vsub.f32 %v62, %v715
    %v717 = vand.u32 %v716, 4294901760
    %718 = vmatprep.mubr.f32.mxu0 %v717
    %v719 = vand.u32 %v61, 4294901760
    %v720 = vsub.f32 %v61, %v719
    %v721 = vand.u32 %v720, 4294901760
    %722 = vmatmul.mubr.f32.gmra.mrb[0].mxu0 %v721
    %v723 = vpop.f32.mrb[0].mxu0
    %v724 = vadd.f32 %v605, %v723
    %v725 = vpop.f32.mrb[0].mxu0
    %726 = vdwg.mxu0
    %727 = vmatprep.subr.mxu0 0.0
    %v728 = vand.u32 %v63, 4294901760
    %v729 = vsub.f32 %v63, %v728
    %v730 = vand.u32 %v729, 4294901760
    %731 = vmatpush1.msra.mxu0 %v730
    %732 = vmatprep.subr.mxu0 0.0
    %v733 = vand.u32 %v64, 4294901760
    %v734 = vsub.f32 %v64, %v733
    %v735 = vand.u32 %v734, 4294901760
    %736 = vmatpush1.msra.mxu0 %v735
    %737 = vmatprep.subr.mxu0 0.0
    %v738 = vand.u32 %v65, 4294901760
    %v739 = vsub.f32 %v65, %v738
    %v740 = vand.u32 %v739, 4294901760
    %741 = vmatpush1.msra.mxu0 %v740
    %742 = vmatprep.subr.mxu0 0.0
    %v743 = vand.u32 %v66, 4294901760
    %v744 = vsub.f32 %v66, %v743
    %v745 = vand.u32 %v744, 4294901760
    %746 = vmatpush1.msra.mxu0 %v745
    %747 = vmatprep.subr.mxu0 0.0
    %v748 = vand.u32 %v67, 4294901760
    %v749 = vsub.f32 %v67, %v748
    %v750 = vand.u32 %v749, 4294901760
    %751 = vmatpush1.msra.mxu0 %v750
    %752 = vmatprep.subr.mxu0 0.0
    %v753 = vand.u32 %v68, 4294901760
    %v754 = vsub.f32 %v68, %v753
    %v755 = vand.u32 %v754, 4294901760
    %756 = vmatpush1.msra.mxu0 %v755
    %757 = vmatprep.subr.mxu0 0.0
    %v758 = vand.u32 %v69, 4294901760
    %v759 = vsub.f32 %v69, %v758
    %v760 = vand.u32 %v759, 4294901760
    %761 = vmatpush1.msra.mxu0 %v760
    %762 = vmatprep.subr.mxu0 0.0
    %v763 = vand.u32 %v70, 4294901760
    %v764 = vsub.f32 %v70, %v763
    %v765 = vand.u32 %v764, 4294901760
    %766 = vmatpush1.msra.mxu0 %v765
    %767 = vmatprep.subr.mxu0 0.0
    %v768 = vand.u32 %v71, 4294901760
    %v769 = vsub.f32 %v71, %v768
    %v770 = vand.u32 %v769, 4294901760
    %771 = vmatpush1.msra.mxu0 %v770
    %772 = vmatprep.subr.mxu0 0.0
    %v773 = vand.u32 %v72, 4294901760
    %v774 = vsub.f32 %v72, %v773
    %v775 = vand.u32 %v774, 4294901760
    %776 = vmatpush1.msra.mxu0 %v775
    %777 = vmatprep.subr.mxu0 0.0
    %v778 = vand.u32 %v73, 4294901760
    %v779 = vsub.f32 %v73, %v778
    %v780 = vand.u32 %v779, 4294901760
    %781 = vmatpush1.msra.mxu0 %v780
    %782 = vmatprep.subr.mxu0 0.0
    %v783 = vand.u32 %v74, 4294901760
    %v784 = vsub.f32 %v74, %v783
    %v785 = vand.u32 %v784, 4294901760
    %786 = vmatpush1.msra.mxu0 %v785
    %787 = vmatprep.subr.mxu0 0.0
    %v788 = vand.u32 %v75, 4294901760
    %v789 = vsub.f32 %v75, %v788
    %v790 = vand.u32 %v789, 4294901760
    %791 = vmatpush1.msra.mxu0 %v790
    %792 = vmatprep.subr.mxu0 0.0
    %v793 = vand.u32 %v76, 4294901760
    %v794 = vsub.f32 %v76, %v793
    %v795 = vand.u32 %v794, 4294901760
    %796 = vmatpush1.msra.mxu0 %v795
    %797 = vmatprep.subr.mxu0 0.0
    %v798 = vand.u32 %v77, 4294901760
    %v799 = vsub.f32 %v77, %v798
    %v800 = vand.u32 %v799, 4294901760
    %801 = vmatpush1.msra.mxu0 %v800
    %802 = vmatprep.subr.mxu0 0.0
    %v803 = vand.u32 %v78, 4294901760
    %v804 = vsub.f32 %v78, %v803
    %v805 = vand.u32 %v804, 4294901760
    %806 = vmatpush1.msra.mxu0 %v805
    %807 = vmatprep.subr.mxu0 0.0
    %v808 = vand.u32 %v79, 4294901760
    %v809 = vsub.f32 %v79, %v808
    %v810 = vand.u32 %v809, 4294901760
    %811 = vmatpush1.msra.mxu0 %v810
    %812 = vmatprep.subr.mxu0 0.0
    %v813 = vand.u32 %v80, 4294901760
    %v814 = vsub.f32 %v80, %v813
    %v815 = vand.u32 %v814, 4294901760
    %816 = vmatpush1.msra.mxu0 %v815
    %817 = vmatprep.subr.mxu0 0.0
    %v818 = vand.u32 %v81, 4294901760
    %v819 = vsub.f32 %v81, %v818
    %v820 = vand.u32 %v819, 4294901760
    %821 = vmatpush1.msra.mxu0 %v820
    %822 = vmatprep.subr.mxu0 0.0
    %v823 = vand.u32 %v82, 4294901760
    %v824 = vsub.f32 %v82, %v823
    %v825 = vand.u32 %v824, 4294901760
    %826 = vmatpush1.msra.mxu0 %v825
    %827 = vmatprep.subr.mxu0 0.0
    %v828 = vand.u32 %v83, 4294901760
    %v829 = vsub.f32 %v83, %v828
    %v830 = vand.u32 %v829, 4294901760
    %831 = vmatpush1.msra.mxu0 %v830
    %832 = vmatprep.subr.mxu0 0.0
    %v833 = vand.u32 %v84, 4294901760
    %v834 = vsub.f32 %v84, %v833
    %v835 = vand.u32 %v834, 4294901760
    %836 = vmatpush1.msra.mxu0 %v835
    %837 = vmatprep.subr.mxu0 0.0
    %v838 = vand.u32 %v85, 4294901760
    %v839 = vsub.f32 %v85, %v838
    %v840 = vand.u32 %v839, 4294901760
    %841 = vmatpush1.msra.mxu0 %v840
    %842 = vmatprep.subr.mxu0 0.0
    %v843 = vand.u32 %v86, 4294901760
    %v844 = vsub.f32 %v86, %v843
    %v845 = vand.u32 %v844, 4294901760
    %846 = vmatpush1.msra.mxu0 %v845
    %847 = vmatprep.subr.mxu0 0.0
    %v848 = vand.u32 %v87, 4294901760
    %v849 = vsub.f32 %v87, %v848
    %v850 = vand.u32 %v849, 4294901760
    %851 = vmatpush1.msra.mxu0 %v850
    %852 = vmatprep.subr.mxu0 0.0
    %v853 = vand.u32 %v88, 4294901760
    %v854 = vsub.f32 %v88, %v853
    %v855 = vand.u32 %v854, 4294901760
    %856 = vmatpush1.msra.mxu0 %v855
    %857 = vmatprep.subr.mxu0 0.0
    %v858 = vand.u32 %v89, 4294901760
    %v859 = vsub.f32 %v89, %v858
    %v860 = vand.u32 %v859, 4294901760
    %861 = vmatpush1.msra.mxu0 %v860
    %862 = vmatprep.subr.mxu0 0.0
    %v863 = vand.u32 %v90, 4294901760
    %v864 = vsub.f32 %v90, %v863
    %v865 = vand.u32 %v864, 4294901760
    %866 = vmatpush1.msra.mxu0 %v865
    %867 = vmatprep.subr.mxu0 0.0
    %v868 = vand.u32 %v91, 4294901760
    %v869 = vsub.f32 %v91, %v868
    %v870 = vand.u32 %v869, 4294901760
    %871 = vmatpush1.msra.mxu0 %v870
    %872 = vmatprep.subr.mxu0 0.0
    %v873 = vand.u32 %v92, 4294901760
    %v874 = vsub.f32 %v92, %v873
    %v875 = vand.u32 %v874, 4294901760
    %876 = vmatpush1.msra.mxu0 %v875
    %877 = vmatprep.subr.mxu0 0.0
    %v878 = vand.u32 %v93, 4294901760
    %v879 = vsub.f32 %v93, %v878
    %v880 = vand.u32 %v879, 4294901760
    %881 = vmatpush1.msra.mxu0 %v880
    %882 = vmatprep.subr.mxu0 0.0
    %v883 = vand.u32 %v94, 4294901760
    %v884 = vsub.f32 %v94, %v883
    %v885 = vand.u32 %v884, 4294901760
    %886 = vmatpush1.msra.mxu0 %v885
    %v887 = vand.u32 %v60, 4294901760
    %888 = vmatprep.mubr.f32.mxu0 %v887
    %v889 = vand.u32 %v59, 4294901760
    %890 = vmatmul.mubr.f32.gmra.mrb[0].mxu0 %v889
    %v891 = vpop.f32.mrb[0].mxu0
    %v892 = vadd.f32 %v713, %v891
    %v893 = vpop.f32.mrb[0].mxu0
    %v894 = vand.u32 %v62, 4294901760
    %895 = vmatprep.mubr.f32.mxu0 %v894
    %v896 = vand.u32 %v61, 4294901760
    %897 = vmatmul.mubr.f32.gmra.mrb[0].mxu0 %v896
    %v898 = vpop.f32.mrb[0].mxu0
    %v899 = vadd.f32 %v724, %v898
    %v900 = vpop.f32.mrb[0].mxu0
    %901 = vdwg.mxu0
    %902 = vmatprep.subr.mxu0 0.0
    %v903 = vand.u32 %v63, 4294901760
    %904 = vmatpush1.msra.mxu0 %v903
    %905 = vmatprep.subr.mxu0 0.0
    %v906 = vand.u32 %v64, 4294901760
    %907 = vmatpush1.msra.mxu0 %v906
    %908 = vmatprep.subr.mxu0 0.0
    %v909 = vand.u32 %v65, 4294901760
    %910 = vmatpush1.msra.mxu0 %v909
    %911 = vmatprep.subr.mxu0 0.0
    %v912 = vand.u32 %v66, 4294901760
    %913 = vmatpush1.msra.mxu0 %v912
    %914 = vmatprep.subr.mxu0 0.0
    %v915 = vand.u32 %v67, 4294901760
    %916 = vmatpush1.msra.mxu0 %v915
    %917 = vmatprep.subr.mxu0 0.0
    %v918 = vand.u32 %v68, 4294901760
    %919 = vmatpush1.msra.mxu0 %v918
    %920 = vmatprep.subr.mxu0 0.0
    %v921 = vand.u32 %v69, 4294901760
    %922 = vmatpush1.msra.mxu0 %v921
    %923 = vmatprep.subr.mxu0 0.0
    %v924 = vand.u32 %v70, 4294901760
    %925 = vmatpush1.msra.mxu0 %v924
    %926 = vmatprep.subr.mxu0 0.0
    %v927 = vand.u32 %v71, 4294901760
    %928 = vmatpush1.msra.mxu0 %v927
    %929 = vmatprep.subr.mxu0 0.0
    %v930 = vand.u32 %v72, 4294901760
    %931 = vmatpush1.msra.mxu0 %v930
    %932 = vmatprep.subr.mxu0 0.0
    %v933 = vand.u32 %v73, 4294901760
    %934 = vmatpush1.msra.mxu0 %v933
    %935 = vmatprep.subr.mxu0 0.0
    %v936 = vand.u32 %v74, 4294901760
    %937 = vmatpush1.msra.mxu0 %v936
    %938 = vmatprep.subr.mxu0 0.0
    %v939 = vand.u32 %v75, 4294901760
    %940 = vmatpush1.msra.mxu0 %v939
    %941 = vmatprep.subr.mxu0 0.0
    %v942 = vand.u32 %v76, 4294901760
    %943 = vmatpush1.msra.mxu0 %v942
    %944 = vmatprep.subr.mxu0 0.0
    %v945 = vand.u32 %v77, 4294901760
    %946 = vmatpush1.msra.mxu0 %v945
    %947 = vmatprep.subr.mxu0 0.0
    %v948 = vand.u32 %v78, 4294901760
    %949 = vmatpush1.msra.mxu0 %v948
    %950 = vmatprep.subr.mxu0 0.0
    %v951 = vand.u32 %v79, 4294901760
    %952 = vmatpush1.msra.mxu0 %v951
    %953 = vmatprep.subr.mxu0 0.0
    %v954 = vand.u32 %v80, 4294901760
    %955 = vmatpush1.msra.mxu0 %v954
    %956 = vmatprep.subr.mxu0 0.0
    %v957 = vand.u32 %v81, 4294901760
    %958 = vmatpush1.msra.mxu0 %v957
    %959 = vmatprep.subr.mxu0 0.0
    %v960 = vand.u32 %v82, 4294901760
    %961 = vmatpush1.msra.mxu0 %v960
    %962 = vmatprep.subr.mxu0 0.0
    %v963 = vand.u32 %v83, 4294901760
    %964 = vmatpush1.msra.mxu0 %v963
    %965 = vmatprep.subr.mxu0 0.0
    %v966 = vand.u32 %v84, 4294901760
    %967 = vmatpush1.msra.mxu0 %v966
    %968 = vmatprep.subr.mxu0 0.0
    %v969 = vand.u32 %v85, 4294901760
    %970 = vmatpush1.msra.mxu0 %v969
    %971 = vmatprep.subr.mxu0 0.0
    %v972 = vand.u32 %v86, 4294901760
    %973 = vmatpush1.msra.mxu0 %v972
    %974 = vmatprep.subr.mxu0 0.0
    %v975 = vand.u32 %v87, 4294901760
    %976 = vmatpush1.msra.mxu0 %v975
    %977 = vmatprep.subr.mxu0 0.0
    %v978 = vand.u32 %v88, 4294901760
    %979 = vmatpush1.msra.mxu0 %v978
    %980 = vmatprep.subr.mxu0 0.0
    %v981 = vand.u32 %v89, 4294901760
    %982 = vmatpush1.msra.mxu0 %v981
    %983 = vmatprep.subr.mxu0 0.0
    %v984 = vand.u32 %v90, 4294901760
    %985 = vmatpush1.msra.mxu0 %v984
    %986 = vmatprep.subr.mxu0 0.0
    %v987 = vand.u32 %v91, 4294901760
    %988 = vmatpush1.msra.mxu0 %v987
    %989 = vmatprep.subr.mxu0 0.0
    %v990 = vand.u32 %v92, 4294901760
    %991 = vmatpush1.msra.mxu0 %v990
    %992 = vmatprep.subr.mxu0 0.0
    %v993 = vand.u32 %v93, 4294901760
    %994 = vmatpush1.msra.mxu0 %v993
    %995 = vmatprep.subr.mxu0 0.0
    %v996 = vand.u32 %v94, 4294901760
    %997 = vmatpush1.msra.mxu0 %v996
    %v998 = vand.u32 %v60, 4294901760
    %999 = vmatprep.mubr.f32.mxu0 %v998
    %v1000 = vand.u32 %v59, 4294901760
    %1001 = vmatmul.mubr.f32.gmra.mrb[0].mxu0 %v1000
    %v1002 = vpop.f32.mrb[0].mxu0
    %v1003 = vadd.f32 %v892, %v1002
    %v1004 = vpop.f32.mrb[0].mxu0
    %v1005 = vand.u32 %v62, 4294901760
    %1006 = vmatprep.mubr.f32.mxu0 %v1005
    %v1007 = vand.u32 %v61, 4294901760
    %1008 = vmatmul.mubr.f32.gmra.mrb[0].mxu0 %v1007
    %v1009 = vpop.f32.mrb[0].mxu0
    %v1010 = vadd.f32 %v899, %v1009
    %v1011 = vpop.f32.mrb[0].mxu0
    %1012 = vdwg.mxu0
    %1013 = vst [vmem:[#allocation5] sm:$0xff] %v1003
    %1014 = vst [vmem:[#allocation5 + $0x8] sm:$0xff] %v1010
    // Predicated region
    $region14: #{_forward_impl.1} parent=1 // pred_check
      _
    $region15: #{_forward_impl.1} parent=1 // pred_check_branch
      %1016 = sbr.rel (0) target = $region17
    $region16: #{_forward_impl.1} parent=1 // pred_region
      %s1018 = ssub.s32 256, 256
      %1019 = vsyncadd [#allocation4], %s1018
      %s1020 = sshll.u32 [#allocation5], 4
      %s1021 = int_to_ptr.vmem [resolvable:$true] %s1020
      %1026 = dma.vmem_to_hbm [thread:$0]  %s1021, 256, %s2, [#allocation4], 128, 128, 8
    $region17: #{_forward_impl.1} parent=1 // pred_fallthru
      _
    // Predicated region
    $region18: #{_forward_impl.1} parent=1 // pred_check
      _
    $region19: #{_forward_impl.1} parent=1 // pred_check_branch
      %1028 = sbr.rel (0) target = $region21
    $region20: #{_forward_impl.1} parent=1 // pred_region
      %1029 = dma.done [#allocation4], 256
    $region21: #{_forward_impl.1} parent=1 // pred_fallthru
      _
    %1030 = vsyncpa [#allocation3], 1
    %1031 = vsyncpa [#allocation4], 1

</llo_original>
